<compile_context>
chip_gen: v7x
topology: tpu7x:2x2x1
jax: 0.10.0
libtpu: 0.0.40
codegen_flags: <defaults>
</compile_context>

<pallas_src>
import functools

import jax
import jax.numpy as jnp
from jax.experimental import pallas as pl
from jax.experimental.pallas import tpu as pltpu


def lstm_head_kernel(x_ref, wih_ref, whh_ref, b_ref, wlast_ref, blast_ref, y_ref,
                     *, seq_len):
    """One batch-tile of the forward pass (everything resident in VMEM).

    x_ref     : (T, TILE_B, D)  time-major batch tile
    wih_ref   : (D, 4*HP)       fused, 128-lane-aligned input->gate weights (gate order i,f,g,o)
    whh_ref   : (HP, 4*HP)      fused, 128-lane-aligned hidden->gate weights
    b_ref     : (1, 4*HP)       combined bias b_ih + b_hh (zero in padded lanes)
    wlast_ref : (HP, OP)        final projection (lane-padded to OP >= 128)
    blast_ref : (1, OP)         final projection bias (lane-padded)
    y_ref     : (TILE_B, OP)    padded output tile (wrapper slices back to (B, out))
    """
    T = seq_len
    HP = whh_ref.shape[0]                 # 128-padded hidden; each gate owns one 128-lane slab
    _, TILE_B, D = x_ref.shape

    # --- Hoisted input projection + bias (off the serial chain), time-major rows t*TILE_B+b ---
    x_flat = x_ref[...].reshape(T * TILE_B, D)        # merge leading dims: layout-compatible
    xw = jnp.dot(x_flat, wih_ref[...],
                 preferred_element_type=jnp.float32) + b_ref[...]   # (T*TILE_B, 4*HP)

    whh = whh_ref[...]                                # loop-invariant, loaded once
    h = jnp.zeros((TILE_B, HP), jnp.float32)          # lanes >= hid_size stay exactly 0
    c = jnp.zeros((TILE_B, HP), jnp.float32)

    # --- Recurrence: exactly one (TILE_B,HP)@(HP,4*HP) MXU op per step, statically unrolled.
    # Gate blocks sit on 128-lane boundaries, so every slice below is a whole-vreg select.
    # TODO(synk): bf16 operands for the two matmuls would cut MXU pass count further but needs
    # a deliberately relaxed test tolerance; kept f32 to preserve 1e-4 parity with the reference.
    # TODO(synk): on v5e, pltpu.matmul_push_rhs(whh) once + matmul_acc_lhs per step would avoid
    # re-streaming the loop-invariant RHS; kept the portable compiler-driven path.
    for t in range(seq_len):
        gates = xw[t * TILE_B:(t + 1) * TILE_B, :] + jnp.dot(
            h, whh, preferred_element_type=jnp.float32)          # (TILE_B, 4*HP)
        sig = jax.nn.sigmoid(gates)                  # one full-width EUP pass -> i, f, o blocks
        g_g = jnp.tanh(gates[:, 2 * HP:3 * HP])      # 128-aligned slice (free) -> single EUP pass
        i_g = sig[:, 0 * HP:1 * HP]
        f_g = sig[:, 1 * HP:2 * HP]
        o_g = sig[:, 3 * HP:4 * HP]
        c = f_g * c + i_g * g_g                      # padded lanes stay 0 (g_g pad = tanh(0) = 0)
        h = o_g * jnp.tanh(c)                        # padded lanes stay 0

    # dropout(final_h) is identity at inference time.
    y = jnp.dot(h, wlast_ref[...], preferred_element_type=jnp.float32) + blast_ref[...]
    y_ref[...] = jnp.clip(y, 0.0, 3.0)               # lane-dense (TILE_B, OP) unmasked store


def init_params(key, in_size, hid_size, out_size):
    """Deterministic synthetic parameters (shapes match nn.LSTM + nn.Linear), repacked
    into 128-lane-aligned, fused, pre-transposed slabs for the kernel."""
    ks = jax.random.split(key, 6)
    scale = 0.1
    # PyTorch layout: weight_ih (4H, D), weight_hh (4H, H), biases (4H,), gate order i,f,g,o.
    w_ih = scale * jax.random.normal(ks[0], (4 * hid_size, in_size), jnp.float32)
    w_hh = scale * jax.random.normal(ks[1], (4 * hid_size, hid_size), jnp.float32)
    b_ih = scale * jax.random.normal(ks[2], (4 * hid_size,), jnp.float32)
    b_hh = scale * jax.random.normal(ks[3], (4 * hid_size,), jnp.float32)
    w_last = scale * jax.random.normal(ks[4], (out_size, hid_size), jnp.float32)
    b_last = scale * jax.random.normal(ks[5], (out_size,), jnp.float32)

    H = hid_size
    HP = pl.cdiv(H, 128) * 128                        # each gate block gets its own 128-lane slab
    OP = pl.cdiv(max(out_size, 1), 128) * 128         # lane-dense output slab
    bias = b_ih + b_hh

    wih_p = jnp.zeros((in_size, 4 * HP), jnp.float32)
    whh_p = jnp.zeros((HP, 4 * HP), jnp.float32)
    b_p = jnp.zeros((1, 4 * HP), jnp.float32)
    for k in range(4):                                # gate order i, f, g, o
        wih_p = wih_p.at[:, k * HP:k * HP + H].set(w_ih[k * H:(k + 1) * H, :].T)
        whh_p = whh_p.at[:H, k * HP:k * HP + H].set(w_hh[k * H:(k + 1) * H, :].T)
        b_p = b_p.at[:, k * HP:k * HP + H].set(bias[k * H:(k + 1) * H].reshape(1, H))

    wlast_p = jnp.zeros((HP, OP), jnp.float32).at[:H, :out_size].set(w_last.T)
    blast_p = jnp.zeros((1, OP), jnp.float32).at[:, :out_size].set(b_last.reshape(1, -1))

    return dict(wih=wih_p, whh=whh_p, b=b_p, wlast=wlast_p, blast=blast_p,
                hid_size=H, hid_pad=HP, out_size=out_size,
                raw=dict(w_ih=w_ih, w_hh=w_hh, b_ih=b_ih, b_hh=b_hh,
                         w_last=w_last, b_last=b_last))


def text_only_forward(x, params, *, max_tile_b=512):
    """x: (B, T, in_size) float32, batch-first (PyTorch convention)."""
    B, T, D = x.shape
    O = params["out_size"]
    OP = params["wlast"].shape[1]

    # The reference module's `final_h_drop.size()[0] == 2` concat quirk (bidirectional /
    # batch==1 path) is intentionally not reproduced.
    assert B != 2, "B == 2 would hit the module's bidirectional-concat quirk"

    BP0 = pl.cdiv(B, 8) * 8                           # 8-sublane alignment
    TILE_B = min(BP0, max_tile_b)                     # batch tile (sized well under VMEM limits)
    grid_b = pl.cdiv(BP0, TILE_B)
    BP = grid_b * TILE_B

    x_p = x if BP == B else jnp.pad(x, ((0, BP - B), (0, 0), (0, 0)))
    x_tm = jnp.transpose(x_p, (1, 0, 2))              # (T, BP, D) time-major: tiny wrapper cost,
                                                      # makes per-step reads contiguous tile views

    kernel = functools.partial(lstm_head_kernel, seq_len=T)
    y_pad = pl.pallas_call(
        kernel,
        out_shape=jax.ShapeDtypeStruct((BP, OP), jnp.float32),
        grid=(grid_b,),
        in_specs=[
            pl.BlockSpec((T, TILE_B, D), lambda i: (0, i, 0)),          # batch-tiled, pipelined
            pl.BlockSpec(params["wih"].shape, lambda i: (0, 0)),        # weights: constant block,
            pl.BlockSpec(params["whh"].shape, lambda i: (0, 0)),        # stay resident across grid
            pl.BlockSpec(params["b"].shape, lambda i: (0, 0)),
            pl.BlockSpec(params["wlast"].shape, lambda i: (0, 0)),
            pl.BlockSpec(params["blast"].shape, lambda i: (0, 0)),
        ],
        out_specs=pl.BlockSpec((TILE_B, OP), lambda i: (i, 0)),
        compiler_params=pltpu.CompilerParams(
            dimension_semantics=("parallel",)),       # megacore-shards batch tiles on v7x
    )(x_tm, params["wih"], params["whh"], params["b"],
      params["wlast"], params["blast"])
    return y_pad[:B, :O]


def reference_forward(x, params):
    """Pure-JAX reference of the PyTorch forward (for correctness checking)."""
    raw = params["raw"]
    H = params["hid_size"]
    w_ih, w_hh = raw["w_ih"], raw["w_hh"]
    b = raw["b_ih"] + raw["b_hh"]

    def cell(carry, x_t):
        h, c = carry
        gates = x_t @ w_ih.T + h @ w_hh.T + b
        i = jax.nn.sigmoid(gates[:, 0 * H:1 * H])
        f = jax.nn.sigmoid(gates[:, 1 * H:2 * H])
        g = jnp.tanh(gates[:, 2 * H:3 * H])
        o = jax.nn.sigmoid(gates[:, 3 * H:4 * H])
        c = f * c + i * g
        h = o * jnp.tanh(c)
        return (h, c), None

    B = x.shape[0]
    h0 = jnp.zeros((B, H), jnp.float32)
    (h_final, _), _ = jax.lax.scan(cell, (h0, h0), jnp.transpose(x, (1, 0, 2)))
    y = h_final @ raw["w_last"].T + raw["b_last"]
    return jnp.clip(y, 0.0, 3.0)


if __name__ == "__main__":
    # Small shapes consistent with the module: batch=4 (avoid the size==2 quirk branch),
    # seq=8, in_size=16, hid_size=32, out_size=8.
    B, T, IN, HID, OUT = 4, 8, 16, 32, 8

    key = jax.random.PRNGKey(0)
    k_x, k_p = jax.random.split(key)
    x = jax.random.normal(k_x, (B, T, IN), jnp.float32)
    params = init_params(k_p, IN, HID, OUT)

    y = text_only_forward(x, params)
    jax.block_until_ready(y)

    y_ref = reference_forward(x, params)
    assert y.shape == (B, OUT)
    assert bool(jnp.all(y >= 0.0)) and bool(jnp.all(y <= 3.0))
    assert jnp.allclose(y, y_ref, rtol=1e-4, atol=1e-4), float(jnp.max(jnp.abs(y - y_ref)))
    print("KERNEL_OK")
</pallas_src>

<mosaic_0001>
module attributes {stable_mosaic.version = 11 : i64} {
  func.func @lstm_head_kernel(%arg0: i32, %arg1: memref<8x8x16xf32, #tpu.memory_space<vmem>>, %arg2: memref<16x512xf32, #tpu.memory_space<vmem>>, %arg3: memref<128x512xf32, #tpu.memory_space<vmem>>, %arg4: memref<1x512xf32, #tpu.memory_space<vmem>>, %arg5: memref<128x128xf32, #tpu.memory_space<vmem>>, %arg6: memref<1x128xf32, #tpu.memory_space<vmem>>, %arg7: memref<8x128xf32, #tpu.memory_space<vmem>>) attributes {dimension_semantics = [#tpu.dimension_semantics<parallel>], iteration_bounds = array<i64: 1>, scalar_prefetch = 0 : i64, scratch_operands = 0 : i64, tpu.core_type = #tpu.core_type<tc>, window_params = [{transform_indices = @transform_0, window_bounds = array<i64: 8, 8, 16>}, {pipeline_mode = #tpu.pipeline_mode<synchronous>, transform_indices = @transform_1, window_bounds = array<i64: 16, 512>}, {pipeline_mode = #tpu.pipeline_mode<synchronous>, transform_indices = @transform_2, window_bounds = array<i64: 128, 512>}, {pipeline_mode = #tpu.pipeline_mode<synchronous>, transform_indices = @transform_3, window_bounds = array<i64: 1, 512>}, {pipeline_mode = #tpu.pipeline_mode<synchronous>, transform_indices = @transform_4, window_bounds = array<i64: 128, 128>}, {pipeline_mode = #tpu.pipeline_mode<synchronous>, transform_indices = @transform_5, window_bounds = array<i64: 1, 128>}, {transform_indices = @transform_6, window_bounds = array<i64: 8, 128>}]} {
    %c0 = arith.constant 0 : index
    %c0_0 = arith.constant 0 : index
    %c0_1 = arith.constant 0 : index
    %0 = vector.load %arg1[%c0, %c0_0, %c0_1] : memref<8x8x16xf32, #tpu.memory_space<vmem>>, vector<8x8x16xf32>
    %1 = vector.shape_cast %0 : vector<8x8x16xf32> to vector<64x16xf32>
    %c0_2 = arith.constant 0 : index
    %c0_3 = arith.constant 0 : index
    %2 = vector.load %arg2[%c0_2, %c0_3] : memref<16x512xf32, #tpu.memory_space<vmem>>, vector<16x512xf32>
    %cst = arith.constant dense<0.000000e+00> : vector<64x512xf32>
    %3 = tpu.matmul %1, %2, %cst {dimension_numbers = #tpu.dot_dimension_numbers<[1], [0], [0], [1], [0, 0, 1, 1], [], []>} : vector<64x16xf32>, vector<16x512xf32>, vector<64x512xf32> -> vector<64x512xf32>
    %c0_4 = arith.constant 0 : index
    %c0_5 = arith.constant 0 : index
    %4 = vector.load %arg4[%c0_4, %c0_5] : memref<1x512xf32, #tpu.memory_space<vmem>>, vector<1x512xf32>
    %5 = vector.broadcast %4 : vector<1x512xf32> to vector<64x512xf32>
    %6 = arith.addf %3, %5 : vector<64x512xf32>
    %c0_6 = arith.constant 0 : index
    %c0_7 = arith.constant 0 : index
    %7 = vector.load %arg3[%c0_6, %c0_7] : memref<128x512xf32, #tpu.memory_space<vmem>>, vector<128x512xf32>
    %cst_8 = arith.constant 0.000000e+00 : f32
    %8 = vector.broadcast %cst_8 : f32 to vector<8x128xf32>
    %cst_9 = arith.constant 0.000000e+00 : f32
    %9 = vector.broadcast %cst_9 : f32 to vector<8x128xf32>
    %10 = vector.extract_strided_slice %6 {offsets = [0, 0], sizes = [8, 512], strides = [1, 1]} : vector<64x512xf32> to vector<8x512xf32>
    %cst_10 = arith.constant dense<0.000000e+00> : vector<8x512xf32>
    %11 = tpu.matmul %8, %7, %cst_10 {dimension_numbers = #tpu.dot_dimension_numbers<[1], [0], [0], [1], [0, 0, 1, 1], [], []>} : vector<8x128xf32>, vector<128x512xf32>, vector<8x512xf32> -> vector<8x512xf32>
    %12 = arith.addf %10, %11 : vector<8x512xf32>
    %13 = arith.negf %12 : vector<8x512xf32>
    %14 = math.exp %13 : vector<8x512xf32>
    %cst_11 = arith.constant 1.000000e+00 : f32
    %15 = vector.broadcast %cst_11 : f32 to vector<8x512xf32>
    %16 = arith.addf %15, %14 : vector<8x512xf32>
    %17 = arith.divf %15, %16 : vector<8x512xf32>
    %18 = vector.extract_strided_slice %12 {offsets = [0, 256], sizes = [8, 128], strides = [1, 1]} : vector<8x512xf32> to vector<8x128xf32>
    %19 = math.tanh %18 : vector<8x128xf32>
    %20 = vector.extract_strided_slice %17 {offsets = [0, 0], sizes = [8, 128], strides = [1, 1]} : vector<8x512xf32> to vector<8x128xf32>
    %21 = vector.extract_strided_slice %17 {offsets = [0, 128], sizes = [8, 128], strides = [1, 1]} : vector<8x512xf32> to vector<8x128xf32>
    %22 = vector.extract_strided_slice %17 {offsets = [0, 384], sizes = [8, 128], strides = [1, 1]} : vector<8x512xf32> to vector<8x128xf32>
    %23 = arith.mulf %21, %9 : vector<8x128xf32>
    %24 = arith.mulf %20, %19 : vector<8x128xf32>
    %25 = arith.addf %23, %24 : vector<8x128xf32>
    %26 = math.tanh %25 : vector<8x128xf32>
    %27 = arith.mulf %22, %26 : vector<8x128xf32>
    %28 = vector.extract_strided_slice %6 {offsets = [8, 0], sizes = [8, 512], strides = [1, 1]} : vector<64x512xf32> to vector<8x512xf32>
    %cst_12 = arith.constant dense<0.000000e+00> : vector<8x512xf32>
    %29 = tpu.matmul %27, %7, %cst_12 {dimension_numbers = #tpu.dot_dimension_numbers<[1], [0], [0], [1], [0, 0, 1, 1], [], []>} : vector<8x128xf32>, vector<128x512xf32>, vector<8x512xf32> -> vector<8x512xf32>
    %30 = arith.addf %28, %29 : vector<8x512xf32>
    %31 = arith.negf %30 : vector<8x512xf32>
    %32 = math.exp %31 : vector<8x512xf32>
    %cst_13 = arith.constant 1.000000e+00 : f32
    %33 = vector.broadcast %cst_13 : f32 to vector<8x512xf32>
    %34 = arith.addf %33, %32 : vector<8x512xf32>
    %35 = arith.divf %33, %34 : vector<8x512xf32>
    %36 = vector.extract_strided_slice %30 {offsets = [0, 256], sizes = [8, 128], strides = [1, 1]} : vector<8x512xf32> to vector<8x128xf32>
    %37 = math.tanh %36 : vector<8x128xf32>
    %38 = vector.extract_strided_slice %35 {offsets = [0, 0], sizes = [8, 128], strides = [1, 1]} : vector<8x512xf32> to vector<8x128xf32>
    %39 = vector.extract_strided_slice %35 {offsets = [0, 128], sizes = [8, 128], strides = [1, 1]} : vector<8x512xf32> to vector<8x128xf32>
    %40 = vector.extract_strided_slice %35 {offsets = [0, 384], sizes = [8, 128], strides = [1, 1]} : vector<8x512xf32> to vector<8x128xf32>
    %41 = arith.mulf %39, %25 : vector<8x128xf32>
    %42 = arith.mulf %38, %37 : vector<8x128xf32>
    %43 = arith.addf %41, %42 : vector<8x128xf32>
    %44 = math.tanh %43 : vector<8x128xf32>
    %45 = arith.mulf %40, %44 : vector<8x128xf32>
    %46 = vector.extract_strided_slice %6 {offsets = [16, 0], sizes = [8, 512], strides = [1, 1]} : vector<64x512xf32> to vector<8x512xf32>
    %cst_14 = arith.constant dense<0.000000e+00> : vector<8x512xf32>
    %47 = tpu.matmul %45, %7, %cst_14 {dimension_numbers = #tpu.dot_dimension_numbers<[1], [0], [0], [1], [0, 0, 1, 1], [], []>} : vector<8x128xf32>, vector<128x512xf32>, vector<8x512xf32> -> vector<8x512xf32>
    %48 = arith.addf %46, %47 : vector<8x512xf32>
    %49 = arith.negf %48 : vector<8x512xf32>
    %50 = math.exp %49 : vector<8x512xf32>
    %cst_15 = arith.constant 1.000000e+00 : f32
    %51 = vector.broadcast %cst_15 : f32 to vector<8x512xf32>
    %52 = arith.addf %51, %50 : vector<8x512xf32>
    %53 = arith.divf %51, %52 : vector<8x512xf32>
    %54 = vector.extract_strided_slice %48 {offsets = [0, 256], sizes = [8, 128], strides = [1, 1]} : vector<8x512xf32> to vector<8x128xf32>
    %55 = math.tanh %54 : vector<8x128xf32>
    %56 = vector.extract_strided_slice %53 {offsets = [0, 0], sizes = [8, 128], strides = [1, 1]} : vector<8x512xf32> to vector<8x128xf32>
    %57 = vector.extract_strided_slice %53 {offsets = [0, 128], sizes = [8, 128], strides = [1, 1]} : vector<8x512xf32> to vector<8x128xf32>
    %58 = vector.extract_strided_slice %53 {offsets = [0, 384], sizes = [8, 128], strides = [1, 1]} : vector<8x512xf32> to vector<8x128xf32>
    %59 = arith.mulf %57, %43 : vector<8x128xf32>
    %60 = arith.mulf %56, %55 : vector<8x128xf32>
    %61 = arith.addf %59, %60 : vector<8x128xf32>
    %62 = math.tanh %61 : vector<8x128xf32>
    %63 = arith.mulf %58, %62 : vector<8x128xf32>
    %64 = vector.extract_strided_slice %6 {offsets = [24, 0], sizes = [8, 512], strides = [1, 1]} : vector<64x512xf32> to vector<8x512xf32>
    %cst_16 = arith.constant dense<0.000000e+00> : vector<8x512xf32>
    %65 = tpu.matmul %63, %7, %cst_16 {dimension_numbers = #tpu.dot_dimension_numbers<[1], [0], [0], [1], [0, 0, 1, 1], [], []>} : vector<8x128xf32>, vector<128x512xf32>, vector<8x512xf32> -> vector<8x512xf32>
    %66 = arith.addf %64, %65 : vector<8x512xf32>
    %67 = arith.negf %66 : vector<8x512xf32>
    %68 = math.exp %67 : vector<8x512xf32>
    %cst_17 = arith.constant 1.000000e+00 : f32
    %69 = vector.broadcast %cst_17 : f32 to vector<8x512xf32>
    %70 = arith.addf %69, %68 : vector<8x512xf32>
    %71 = arith.divf %69, %70 : vector<8x512xf32>
    %72 = vector.extract_strided_slice %66 {offsets = [0, 256], sizes = [8, 128], strides = [1, 1]} : vector<8x512xf32> to vector<8x128xf32>
    %73 = math.tanh %72 : vector<8x128xf32>
    %74 = vector.extract_strided_slice %71 {offsets = [0, 0], sizes = [8, 128], strides = [1, 1]} : vector<8x512xf32> to vector<8x128xf32>
    %75 = vector.extract_strided_slice %71 {offsets = [0, 128], sizes = [8, 128], strides = [1, 1]} : vector<8x512xf32> to vector<8x128xf32>
    %76 = vector.extract_strided_slice %71 {offsets = [0, 384], sizes = [8, 128], strides = [1, 1]} : vector<8x512xf32> to vector<8x128xf32>
    %77 = arith.mulf %75, %61 : vector<8x128xf32>
    %78 = arith.mulf %74, %73 : vector<8x128xf32>
    %79 = arith.addf %77, %78 : vector<8x128xf32>
    %80 = math.tanh %79 : vector<8x128xf32>
    %81 = arith.mulf %76, %80 : vector<8x128xf32>
    %82 = vector.extract_strided_slice %6 {offsets = [32, 0], sizes = [8, 512], strides = [1, 1]} : vector<64x512xf32> to vector<8x512xf32>
    %cst_18 = arith.constant dense<0.000000e+00> : vector<8x512xf32>
    %83 = tpu.matmul %81, %7, %cst_18 {dimension_numbers = #tpu.dot_dimension_numbers<[1], [0], [0], [1], [0, 0, 1, 1], [], []>} : vector<8x128xf32>, vector<128x512xf32>, vector<8x512xf32> -> vector<8x512xf32>
    %84 = arith.addf %82, %83 : vector<8x512xf32>
    %85 = arith.negf %84 : vector<8x512xf32>
    %86 = math.exp %85 : vector<8x512xf32>
    %cst_19 = arith.constant 1.000000e+00 : f32
    %87 = vector.broadcast %cst_19 : f32 to vector<8x512xf32>
    %88 = arith.addf %87, %86 : vector<8x512xf32>
    %89 = arith.divf %87, %88 : vector<8x512xf32>
    %90 = vector.extract_strided_slice %84 {offsets = [0, 256], sizes = [8, 128], strides = [1, 1]} : vector<8x512xf32> to vector<8x128xf32>
    %91 = math.tanh %90 : vector<8x128xf32>
    %92 = vector.extract_strided_slice %89 {offsets = [0, 0], sizes = [8, 128], strides = [1, 1]} : vector<8x512xf32> to vector<8x128xf32>
    %93 = vector.extract_strided_slice %89 {offsets = [0, 128], sizes = [8, 128], strides = [1, 1]} : vector<8x512xf32> to vector<8x128xf32>
    %94 = vector.extract_strided_slice %89 {offsets = [0, 384], sizes = [8, 128], strides = [1, 1]} : vector<8x512xf32> to vector<8x128xf32>
    %95 = arith.mulf %93, %79 : vector<8x128xf32>
    %96 = arith.mulf %92, %91 : vector<8x128xf32>
    %97 = arith.addf %95, %96 : vector<8x128xf32>
    %98 = math.tanh %97 : vector<8x128xf32>
    %99 = arith.mulf %94, %98 : vector<8x128xf32>
    %100 = vector.extract_strided_slice %6 {offsets = [40, 0], sizes = [8, 512], strides = [1, 1]} : vector<64x512xf32> to vector<8x512xf32>
    %cst_20 = arith.constant dense<0.000000e+00> : vector<8x512xf32>
    %101 = tpu.matmul %99, %7, %cst_20 {dimension_numbers = #tpu.dot_dimension_numbers<[1], [0], [0], [1], [0, 0, 1, 1], [], []>} : vector<8x128xf32>, vector<128x512xf32>, vector<8x512xf32> -> vector<8x512xf32>
    %102 = arith.addf %100, %101 : vector<8x512xf32>
    %103 = arith.negf %102 : vector<8x512xf32>
    %104 = math.exp %103 : vector<8x512xf32>
    %cst_21 = arith.constant 1.000000e+00 : f32
    %105 = vector.broadcast %cst_21 : f32 to vector<8x512xf32>
    %106 = arith.addf %105, %104 : vector<8x512xf32>
    %107 = arith.divf %105, %106 : vector<8x512xf32>
    %108 = vector.extract_strided_slice %102 {offsets = [0, 256], sizes = [8, 128], strides = [1, 1]} : vector<8x512xf32> to vector<8x128xf32>
    %109 = math.tanh %108 : vector<8x128xf32>
    %110 = vector.extract_strided_slice %107 {offsets = [0, 0], sizes = [8, 128], strides = [1, 1]} : vector<8x512xf32> to vector<8x128xf32>
    %111 = vector.extract_strided_slice %107 {offsets = [0, 128], sizes = [8, 128], strides = [1, 1]} : vector<8x512xf32> to vector<8x128xf32>
    %112 = vector.extract_strided_slice %107 {offsets = [0, 384], sizes = [8, 128], strides = [1, 1]} : vector<8x512xf32> to vector<8x128xf32>
    %113 = arith.mulf %111, %97 : vector<8x128xf32>
    %114 = arith.mulf %110, %109 : vector<8x128xf32>
    %115 = arith.addf %113, %114 : vector<8x128xf32>
    %116 = math.tanh %115 : vector<8x128xf32>
    %117 = arith.mulf %112, %116 : vector<8x128xf32>
    %118 = vector.extract_strided_slice %6 {offsets = [48, 0], sizes = [8, 512], strides = [1, 1]} : vector<64x512xf32> to vector<8x512xf32>
    %cst_22 = arith.constant dense<0.000000e+00> : vector<8x512xf32>
    %119 = tpu.matmul %117, %7, %cst_22 {dimension_numbers = #tpu.dot_dimension_numbers<[1], [0], [0], [1], [0, 0, 1, 1], [], []>} : vector<8x128xf32>, vector<128x512xf32>, vector<8x512xf32> -> vector<8x512xf32>
    %120 = arith.addf %118, %119 : vector<8x512xf32>
    %121 = arith.negf %120 : vector<8x512xf32>
    %122 = math.exp %121 : vector<8x512xf32>
    %cst_23 = arith.constant 1.000000e+00 : f32
    %123 = vector.broadcast %cst_23 : f32 to vector<8x512xf32>
    %124 = arith.addf %123, %122 : vector<8x512xf32>
    %125 = arith.divf %123, %124 : vector<8x512xf32>
    %126 = vector.extract_strided_slice %120 {offsets = [0, 256], sizes = [8, 128], strides = [1, 1]} : vector<8x512xf32> to vector<8x128xf32>
    %127 = math.tanh %126 : vector<8x128xf32>
    %128 = vector.extract_strided_slice %125 {offsets = [0, 0], sizes = [8, 128], strides = [1, 1]} : vector<8x512xf32> to vector<8x128xf32>
    %129 = vector.extract_strided_slice %125 {offsets = [0, 128], sizes = [8, 128], strides = [1, 1]} : vector<8x512xf32> to vector<8x128xf32>
    %130 = vector.extract_strided_slice %125 {offsets = [0, 384], sizes = [8, 128], strides = [1, 1]} : vector<8x512xf32> to vector<8x128xf32>
    %131 = arith.mulf %129, %115 : vector<8x128xf32>
    %132 = arith.mulf %128, %127 : vector<8x128xf32>
    %133 = arith.addf %131, %132 : vector<8x128xf32>
    %134 = math.tanh %133 : vector<8x128xf32>
    %135 = arith.mulf %130, %134 : vector<8x128xf32>
    %136 = vector.extract_strided_slice %6 {offsets = [56, 0], sizes = [8, 512], strides = [1, 1]} : vector<64x512xf32> to vector<8x512xf32>
    %cst_24 = arith.constant dense<0.000000e+00> : vector<8x512xf32>
    %137 = tpu.matmul %135, %7, %cst_24 {dimension_numbers = #tpu.dot_dimension_numbers<[1], [0], [0], [1], [0, 0, 1, 1], [], []>} : vector<8x128xf32>, vector<128x512xf32>, vector<8x512xf32> -> vector<8x512xf32>
    %138 = arith.addf %136, %137 : vector<8x512xf32>
    %139 = arith.negf %138 : vector<8x512xf32>
    %140 = math.exp %139 : vector<8x512xf32>
    %cst_25 = arith.constant 1.000000e+00 : f32
    %141 = vector.broadcast %cst_25 : f32 to vector<8x512xf32>
    %142 = arith.addf %141, %140 : vector<8x512xf32>
    %143 = arith.divf %141, %142 : vector<8x512xf32>
    %144 = vector.extract_strided_slice %138 {offsets = [0, 256], sizes = [8, 128], strides = [1, 1]} : vector<8x512xf32> to vector<8x128xf32>
    %145 = math.tanh %144 : vector<8x128xf32>
    %146 = vector.extract_strided_slice %143 {offsets = [0, 0], sizes = [8, 128], strides = [1, 1]} : vector<8x512xf32> to vector<8x128xf32>
    %147 = vector.extract_strided_slice %143 {offsets = [0, 128], sizes = [8, 128], strides = [1, 1]} : vector<8x512xf32> to vector<8x128xf32>
    %148 = vector.extract_strided_slice %143 {offsets = [0, 384], sizes = [8, 128], strides = [1, 1]} : vector<8x512xf32> to vector<8x128xf32>
    %149 = arith.mulf %147, %133 : vector<8x128xf32>
    %150 = arith.mulf %146, %145 : vector<8x128xf32>
    %151 = arith.addf %149, %150 : vector<8x128xf32>
    %152 = math.tanh %151 : vector<8x128xf32>
    %153 = arith.mulf %148, %152 : vector<8x128xf32>
    %c0_26 = arith.constant 0 : index
    %c0_27 = arith.constant 0 : index
    %154 = vector.load %arg5[%c0_26, %c0_27] : memref<128x128xf32, #tpu.memory_space<vmem>>, vector<128x128xf32>
    %cst_28 = arith.constant dense<0.000000e+00> : vector<8x128xf32>
    %155 = tpu.matmul %153, %154, %cst_28 {dimension_numbers = #tpu.dot_dimension_numbers<[1], [0], [0], [1], [0, 0, 1, 1], [], []>} : vector<8x128xf32>, vector<128x128xf32>, vector<8x128xf32> -> vector<8x128xf32>
    %c0_29 = arith.constant 0 : index
    %c0_30 = arith.constant 0 : index
    %156 = vector.load %arg6[%c0_29, %c0_30] : memref<1x128xf32, #tpu.memory_space<vmem>>, vector<1x128xf32>
    %157 = vector.broadcast %156 : vector<1x128xf32> to vector<8x128xf32>
    %158 = arith.addf %155, %157 : vector<8x128xf32>
    %cst_31 = arith.constant 0.000000e+00 : f32
    %cst_32 = arith.constant 3.000000e+00 : f32
    %159 = vector.broadcast %cst_31 : f32 to vector<8x128xf32>
    %160 = arith.maximumf %159, %158 : vector<8x128xf32>
    %161 = vector.broadcast %cst_32 : f32 to vector<8x128xf32>
    %162 = arith.minimumf %161, %160 : vector<8x128xf32>
    %c0_33 = arith.constant 0 : index
    %c0_34 = arith.constant 0 : index
    %163 = vector.load %arg7[%c0_33, %c0_34] : memref<8x128xf32, #tpu.memory_space<vmem>>, vector<8x128xf32>
    tpu.vector_store %arg7[%c0_33, %c0_34], %162 {strides = array<i32>} : memref<8x128xf32, #tpu.memory_space<vmem>>, vector<8x128xf32>,
    return
  }
  func.func @transform_0(%arg0: i32) -> (i32, i32, i32) {
    %c0_i32 = arith.constant 0 : i32
    %c0_i32_0 = arith.constant 0 : i32
    %c0_i32_1 = arith.constant 0 : i32
    return %c0_i32, %arg0, %c0_i32_0 : i32, i32, i32
  }
  func.func @transform_1(%arg0: i32) -> (i32, i32) {
    %c0_i32 = arith.constant 0 : i32
    %c0_i32_0 = arith.constant 0 : i32
    %c0_i32_1 = arith.constant 0 : i32
    return %c0_i32, %c0_i32_0 : i32, i32
  }
  func.func @transform_2(%arg0: i32) -> (i32, i32) {
    %c0_i32 = arith.constant 0 : i32
    %c0_i32_0 = arith.constant 0 : i32
    %c0_i32_1 = arith.constant 0 : i32
    return %c0_i32, %c0_i32_0 : i32, i32
  }
  func.func @transform_3(%arg0: i32) -> (i32, i32) {
    %c0_i32 = arith.constant 0 : i32
    %c0_i32_0 = arith.constant 0 : i32
    %c0_i32_1 = arith.constant 0 : i32
    return %c0_i32, %c0_i32_0 : i32, i32
  }
  func.func @transform_4(%arg0: i32) -> (i32, i32) {
    %c0_i32 = arith.constant 0 : i32
    %c0_i32_0 = arith.constant 0 : i32
    %c0_i32_1 = arith.constant 0 : i32
    return %c0_i32, %c0_i32_0 : i32, i32
  }
  func.func @transform_5(%arg0: i32) -> (i32, i32) {
    %c0_i32 = arith.constant 0 : i32
    %c0_i32_0 = arith.constant 0 : i32
    %c0_i32_1 = arith.constant 0 : i32
    return %c0_i32, %c0_i32_0 : i32, i32
  }
  func.func @transform_6(%arg0: i32) -> (i32, i32) {
    %c0_i32 = arith.constant 0 : i32
    %c0_i32_0 = arith.constant 0 : i32
    return %arg0, %c0_i32 : i32, i32
  }
}

</mosaic_0001>

<llo_original>
// kernel: tpu_custom_call.1
$region0: #{tpu_custom_call.1}
  #allocation0 [shape = 'u32[]', space=smem, size = 0x4, offset = 0x4, fixed_abs, tag = 'smem constant byte address 0x4 - core index']
  #allocation1 [shape = 'u32[144,128]{1,0:T(1,128)}', space=vmem, size = 0x12000, scoped, tag = 'internal scratch']
  %s0 = inlined_call_operand.hbm [shape: f32[8,8,16], index: 0, kind: input, shape index: {}]
  %s1 = inlined_call_operand.hbm [shape: f32[16,512], index: 1, kind: input, shape index: {}]
  %s2 = inlined_call_operand.hbm [shape: f32[128,512], index: 2, kind: input, shape index: {}]
  %s3 = inlined_call_operand.vmem [shape: f32[1,512], index: 3, kind: input, shape index: {}]
  %s4 = inlined_call_operand.hbm [shape: f32[128,128], index: 4, kind: input, shape index: {}]
  %s5 = inlined_call_operand.vmem [shape: f32[1,128], index: 5, kind: input, shape index: {}]
  %s6 = inlined_call_operand.hbm [shape: f32[8,128], index: 6, kind: output, shape index: {}]
  %s7 = sld [smem:[#allocation0]]
  $region50: #{tpu_custom_call.1} parent=0
    _
  %s9 = ssub.s32 1, %s7
  %s10 = scalar_select 0, %s9, %s7
  $region1: #{tpu_custom_call.1} parent=0
    #allocation2 [shape = 'u8[32768]{0}', space=vmem, size = 0x8000, scoped, tag = 'input window, operand 0, single buffered']
    #allocation3 [shape = 's32[1]{0}', space=sflag, size = 0x4, scoped, tag = 'scoped memory for tpu_custom_call.1']
    #allocation4 [shape = 's32[1]{0}', space=sflag, size = 0x4, scoped, tag = 'scoped memory for tpu_custom_call.1']
    #allocation5 [shape = 'u8[32768]{0}', space=vmem, size = 0x8000, scoped, tag = 'input window, operand 1, single buffered']
    #allocation6 [shape = 's32[1]{0}', space=sflag, size = 0x4, scoped, tag = 'scoped memory for tpu_custom_call.1']
    #allocation7 [shape = 'u8[262144]{0}', space=vmem, size = 0x40000, scoped, tag = 'input window, operand 2, single buffered']
    #allocation8 [shape = 'u8[65536]{0}', space=vmem, size = 0x10000, scoped, tag = 'input window, operand 4, single buffered']
    #allocation9 [shape = 's32[1]{0}', space=sflag, size = 0x4, scoped, tag = 'scoped memory for tpu_custom_call.1']
    #allocation10 [shape = 'u8[4096]{0}', space=vmem, size = 0x1000, scoped, tag = 'output window, operand 0, single buffered']
    %11 = vsyncpa [#allocation3], 0
    %12 = vsyncpa [#allocation6], 0
    %13 = vsyncpa [#allocation9], 0
    %14 = vsyncpa [#allocation4], 0
    // Predicated region
    $region2: #{tpu_custom_call.1} parent=1 // pred_check
      _
    $region3: #{tpu_custom_call.1} parent=1 // pred_check_branch
      %16 = sbr.rel (0) target = $region5
    $region4: #{tpu_custom_call.1} parent=1 // pred_region
      %s18 = ssub.s32 1024, 1024
      %19 = vsyncadd [#allocation3], %s18
      %s20 = sshll.u32 [#allocation2], 4
      %s21 = int_to_ptr.vmem [resolvable:$true] %s20
      %26 = dma.hbm_to_vmem [thread:$0]  %s0, 1024, %s21, [#allocation3], 128, 128, 8
    $region5: #{tpu_custom_call.1} parent=1 // pred_fallthru
      _
    // Predicated region
    $region6: #{tpu_custom_call.1} parent=1 // pred_check
      _
    $region7: #{tpu_custom_call.1} parent=1 // pred_check_branch
      %28 = sbr.rel (0) target = $region9
    $region8: #{tpu_custom_call.1} parent=1 // pred_region
      %s30 = ssub.s32 1024, 1024
      %31 = vsyncadd [#allocation6], %s30
      %s32 = sshll.u32 [#allocation5], 4
      %s33 = int_to_ptr.vmem [resolvable:$true] %s32
      %38 = dma.hbm_to_vmem [thread:$0]  %s1, 1024, %s33, [#allocation6], 512, 512, 32
    $region9: #{tpu_custom_call.1} parent=1 // pred_fallthru
      _
    // Predicated region
    $region10: #{tpu_custom_call.1} parent=1 // pred_check
      _
    $region11: #{tpu_custom_call.1} parent=1 // pred_check_branch
      %40 = sbr.rel (0) target = $region13
    $region12: #{tpu_custom_call.1} parent=1 // pred_region
      %s42 = ssub.s32 8192, 8192
      %43 = vsyncadd [#allocation6], %s42
      %s44 = sshll.u32 [#allocation7], 4
      %s45 = int_to_ptr.vmem [resolvable:$true] %s44
      %50 = dma.hbm_to_vmem [thread:$0]  %s2, 8192, %s45, [#allocation6], 512, 512, 32
    $region13: #{tpu_custom_call.1} parent=1 // pred_fallthru
      _
    // Predicated region
    $region14: #{tpu_custom_call.1} parent=1 // pred_check
      _
    $region15: #{tpu_custom_call.1} parent=1 // pred_check_branch
      %52 = sbr.rel (0) target = $region17
    $region16: #{tpu_custom_call.1} parent=1 // pred_region
      _
    $region17: #{tpu_custom_call.1} parent=1 // pred_fallthru
      _
    // Predicated region
    $region18: #{tpu_custom_call.1} parent=1 // pred_check
      _
    $region19: #{tpu_custom_call.1} parent=1 // pred_check_branch
      %54 = sbr.rel (0) target = $region21
    $region20: #{tpu_custom_call.1} parent=1 // pred_region
      %s56 = ssub.s32 2048, 2048
      %57 = vsyncadd [#allocation9], %s56
      %s58 = sshll.u32 [#allocation8], 4
      %s59 = int_to_ptr.vmem [resolvable:$true] %s58
      %64 = dma.hbm_to_vmem [thread:$0]  %s4, 2048, %s59, [#allocation9], 128, 128, 8
    $region21: #{tpu_custom_call.1} parent=1 // pred_fallthru
      _
    // Predicated region
    $region22: #{tpu_custom_call.1} parent=1 // pred_check
      _
    $region23: #{tpu_custom_call.1} parent=1 // pred_check_branch
      %66 = sbr.rel (0) target = $region25
    $region24: #{tpu_custom_call.1} parent=1 // pred_region
      _
    $region25: #{tpu_custom_call.1} parent=1 // pred_fallthru
      _
    // Predicated region
    $region26: #{tpu_custom_call.1} parent=1 // pred_check
      _
    $region27: #{tpu_custom_call.1} parent=1 // pred_check_branch
      %68 = sbr.rel (0) target = $region29
    $region28: #{tpu_custom_call.1} parent=1 // pred_region
      %69 = dma.done [#allocation3], 1024
    $region29: #{tpu_custom_call.1} parent=1 // pred_fallthru
      _
    // Predicated region
    $region30: #{tpu_custom_call.1} parent=1 // pred_check
      _
    $region31: #{tpu_custom_call.1} parent=1 // pred_check_branch
      %71 = sbr.rel (0) target = $region33
    $region32: #{tpu_custom_call.1} parent=1 // pred_region
      %72 = dma.done [#allocation6], 1024
    $region33: #{tpu_custom_call.1} parent=1 // pred_fallthru
      _
    // Predicated region
    $region34: #{tpu_custom_call.1} parent=1 // pred_check
      _
    $region35: #{tpu_custom_call.1} parent=1 // pred_check_branch
      %74 = sbr.rel (0) target = $region37
    $region36: #{tpu_custom_call.1} parent=1 // pred_region
      %75 = dma.done [#allocation6], 8192
    $region37: #{tpu_custom_call.1} parent=1 // pred_fallthru
      _
    // Predicated region
    $region38: #{tpu_custom_call.1} parent=1 // pred_check
      _
    $region39: #{tpu_custom_call.1} parent=1 // pred_check_branch
      %77 = sbr.rel (0) target = $region41
    $region40: #{tpu_custom_call.1} parent=1 // pred_region
      %78 = dma.done [#allocation9], 2048
    $region41: #{tpu_custom_call.1} parent=1 // pred_fallthru
      _
    %v79 = vld [vmem:[#allocation2] sm:$0xff]
    %v80 = vld [vmem:[#allocation2 + $0x8] sm:$0xff]
    %v81 = vld [vmem:[#allocation2 + $0x10] sm:$0xff]
    %v82 = vld [vmem:[#allocation2 + $0x18] sm:$0xff]
    %v83 = vld [vmem:[#allocation2 + $0x20] sm:$0xff]
    %v84 = vld [vmem:[#allocation2 + $0x28] sm:$0xff]
    %v85 = vld [vmem:[#allocation2 + $0x30] sm:$0xff]
    %v86 = vld [vmem:[#allocation2 + $0x38] sm:$0xff]
    %v87 = vld [vmem:[#allocation5] sm:$0xff]
    %v88 = vld [vmem:[#allocation5 + $0x8] sm:$0xff]
    %v89 = vld [vmem:[#allocation5 + $0x10] sm:$0xff]
    %v90 = vld [vmem:[#allocation5 + $0x18] sm:$0xff]
    %v91 = vld [vmem:[#allocation5 + $0x20] sm:$0xff]
    %v92 = vld [vmem:[#allocation5 + $0x28] sm:$0xff]
    %v93 = vld [vmem:[#allocation5 + $0x30] sm:$0xff]
    %v94 = vld [vmem:[#allocation5 + $0x38] sm:$0xff]
    %v95 = vld [vmem:[%s3] sm:$0xf]
    %v97 = vlaneseq
    %v98 = vshrl.u32 %v97, 7
    %v99 = vsub.s32 0, %v98
    %v100 = vrot.slane %v95, %v99
    %v101 = vlaneseq
    %v102 = vshrl.u32 %v101, 7
    %v103 = vsub.s32 1, %v102
    %v104 = vrot.slane %v95, %v103
    %v105 = vlaneseq
    %v106 = vshrl.u32 %v105, 7
    %v107 = vsub.s32 2, %v106
    %v108 = vrot.slane %v95, %v107
    %v109 = vlaneseq
    %v110 = vshrl.u32 %v109, 7
    %v111 = vsub.s32 3, %v110
    %v112 = vrot.slane %v95, %v111
    %vm117 = vcmask 130048
    %v119 = vsel %vm117, %v79, 0
    %v122 = vsel %vm117, %v80, 0
    %v125 = vsel %vm117, %v81, 0
    %v128 = vsel %vm117, %v82, 0
    %v131 = vsel %vm117, %v83, 0
    %v134 = vsel %vm117, %v84, 0
    %v137 = vsel %vm117, %v85, 0
    %v140 = vsel %vm117, %v86, 0
    %142 = vmatprep.subr.mxu0 %v88
    %143 = vmatpush1.msra.mxu0 %v87
    %144 = vmatprep.subr.mxu0 %v92
    %145 = vmatpush1.msra.mxu0 %v91
    %146 = vmatprep.subr.mxu0 0.0
    %147 = vmatpush1.msra.mxu0 0.0
    %148 = vmatprep.subr.mxu0 0.0
    %149 = vmatpush1.msra.mxu0 0.0
    %150 = vmatprep.subr.mxu0 0.0
    %151 = vmatpush1.msra.mxu0 0.0
    %152 = vmatprep.subr.mxu0 0.0
    %153 = vmatpush1.msra.mxu0 0.0
    %154 = vmatprep.subr.mxu0 0.0
    %155 = vmatpush1.msra.mxu0 0.0
    %156 = vmatprep.subr.mxu0 0.0
    %157 = vmatpush1.msra.mxu0 0.0
    %158 = vmatprep.subr.mxu0 0.0
    %159 = vmatpush1.msra.mxu0 0.0
    %160 = vmatprep.subr.mxu0 0.0
    %161 = vmatpush1.msra.mxu0 0.0
    %162 = vmatprep.subr.mxu0 0.0
    %163 = vmatpush1.msra.mxu0 0.0
    %164 = vmatprep.subr.mxu0 0.0
    %165 = vmatpush1.msra.mxu0 0.0
    %166 = vmatprep.subr.mxu0 0.0
    %167 = vmatpush1.msra.mxu0 0.0
    %168 = vmatprep.subr.mxu0 0.0
    %169 = vmatpush1.msra.mxu0 0.0
    %170 = vmatprep.subr.mxu0 0.0
    %171 = vmatpush1.msra.mxu0 0.0
    %172 = vmatprep.subr.mxu0 0.0
    %173 = vmatpush1.msra.mxu0 0.0
    %174 = vmatprep.subr.mxu0 0.0
    %175 = vmatpush1.msra.mxu0 0.0
    %176 = vmatprep.subr.mxu0 0.0
    %177 = vmatpush1.msra.mxu0 0.0
    %178 = vmatprep.subr.mxu0 0.0
    %179 = vmatpush1.msra.mxu0 0.0
    %180 = vmatprep.subr.mxu0 0.0
    %181 = vmatpush1.msra.mxu0 0.0
    %182 = vmatprep.subr.mxu0 0.0
    %183 = vmatpush1.msra.mxu0 0.0
    %184 = vmatprep.subr.mxu0 0.0
    %185 = vmatpush1.msra.mxu0 0.0
    %186 = vmatprep.subr.mxu0 0.0
    %187 = vmatpush1.msra.mxu0 0.0
    %188 = vmatprep.subr.mxu0 0.0
    %189 = vmatpush1.msra.mxu0 0.0
    %190 = vmatprep.subr.mxu0 0.0
    %191 = vmatpush1.msra.mxu0 0.0
    %192 = vmatprep.subr.mxu0 0.0
    %193 = vmatpush1.msra.mxu0 0.0
    %194 = vmatprep.subr.mxu0 0.0
    %195 = vmatpush1.msra.mxu0 0.0
    %196 = vmatprep.subr.mxu0 0.0
    %197 = vmatpush1.msra.mxu0 0.0
    %198 = vmatprep.subr.mxu0 0.0
    %199 = vmatpush1.msra.mxu0 0.0
    %200 = vmatprep.subr.mxu0 0.0
    %201 = vmatpush1.msra.mxu0 0.0
    %202 = vmatprep.subr.mxu0 0.0
    %203 = vmatpush1.msra.mxu0 0.0
    %204 = vmatprep.subr.mxu0 0.0
    %205 = vmatpush1.msra.mxu0 0.0
    %206 = vmatprep.mubr.f32.mxu0 0.0
    %207 = vmatmul.mubr.f32.gmra.mrb[0].mxu0 %v119
    %v208 = vpop.f32.mrb[0].mxu0
    %v209 = vadd.f32 %v100, %v208
    %v210 = vpop.f32.mrb[0].mxu0
    %v211 = vadd.f32 %v104, %v210
    %212 = vmatprep.mubr.f32.mxu0 0.0
    %213 = vmatmul.mubr.f32.gmra.mrb[0].mxu0 %v122
    %v214 = vpop.f32.mrb[0].mxu0
    %v215 = vadd.f32 %v100, %v214
    %v216 = vpop.f32.mrb[0].mxu0
    %v217 = vadd.f32 %v104, %v216
    %218 = vmatprep.mubr.f32.mxu0 0.0
    %219 = vmatmul.mubr.f32.gmra.mrb[0].mxu0 %v125
    %v220 = vpop.f32.mrb[0].mxu0
    %v221 = vadd.f32 %v100, %v220
    %v222 = vpop.f32.mrb[0].mxu0
    %v223 = vadd.f32 %v104, %v222
    %224 = vmatprep.mubr.f32.mxu0 0.0
    %225 = vmatmul.mubr.f32.gmra.mrb[0].mxu0 %v128
    %v226 = vpop.f32.mrb[0].mxu0
    %v227 = vadd.f32 %v100, %v226
    %v228 = vpop.f32.mrb[0].mxu0
    %v229 = vadd.f32 %v104, %v228
    %230 = vmatprep.mubr.f32.mxu0 0.0
    %231 = vmatmul.mubr.f32.gmra.mrb[0].mxu0 %v131
    %v232 = vpop.f32.mrb[0].mxu0
    %v233 = vadd.f32 %v100, %v232
    %v234 = vpop.f32.mrb[0].mxu0
    %v235 = vadd.f32 %v104, %v234
    %236 = vmatprep.mubr.f32.mxu0 0.0
    %237 = vmatmul.mubr.f32.gmra.mrb[0].mxu0 %v134
    %v238 = vpop.f32.mrb[0].mxu0
    %v239 = vadd.f32 %v100, %v238
    %v240 = vpop.f32.mrb[0].mxu0
    %v241 = vadd.f32 %v104, %v240
    %242 = vmatprep.mubr.f32.mxu0 0.0
    %243 = vmatmul.mubr.f32.gmra.mrb[0].mxu0 %v137
    %v244 = vpop.f32.mrb[0].mxu0
    %v245 = vadd.f32 %v100, %v244
    %v246 = vpop.f32.mrb[0].mxu0
    %v247 = vadd.f32 %v104, %v246
    %248 = vmatprep.mubr.f32.mxu0 0.0
    %249 = vmatmul.mubr.f32.gmra.mrb[0].mxu0 %v140
    %v250 = vpop.f32.mrb[0].mxu0
    %v251 = vadd.f32 %v100, %v250
    %v252 = vpop.f32.mrb[0].mxu0
    %v253 = vadd.f32 %v104, %v252
    %254 = vdwg.mxu0
    %255 = vmatprep.subr.mxu0 %v90
    %256 = vmatpush1.msra.mxu0 %v89
    %257 = vmatprep.subr.mxu0 %v94
    %258 = vmatpush1.msra.mxu0 %v93
    %259 = vmatprep.subr.mxu0 0.0
    %260 = vmatpush1.msra.mxu0 0.0
    %261 = vmatprep.subr.mxu0 0.0
    %262 = vmatpush1.msra.mxu0 0.0
    %263 = vmatprep.subr.mxu0 0.0
    %264 = vmatpush1.msra.mxu0 0.0
    %265 = vmatprep.subr.mxu0 0.0
    %266 = vmatpush1.msra.mxu0 0.0
    %267 = vmatprep.subr.mxu0 0.0
    %268 = vmatpush1.msra.mxu0 0.0
    %269 = vmatprep.subr.mxu0 0.0
    %270 = vmatpush1.msra.mxu0 0.0
    %271 = vmatprep.subr.mxu0 0.0
    %272 = vmatpush1.msra.mxu0 0.0
    %273 = vmatprep.subr.mxu0 0.0
    %274 = vmatpush1.msra.mxu0 0.0
    %275 = vmatprep.subr.mxu0 0.0
    %276 = vmatpush1.msra.mxu0 0.0
    %277 = vmatprep.subr.mxu0 0.0
    %278 = vmatpush1.msra.mxu0 0.0
    %279 = vmatprep.subr.mxu0 0.0
    %280 = vmatpush1.msra.mxu0 0.0
    %281 = vmatprep.subr.mxu0 0.0
    %282 = vmatpush1.msra.mxu0 0.0
    %283 = vmatprep.subr.mxu0 0.0
    %284 = vmatpush1.msra.mxu0 0.0
    %285 = vmatprep.subr.mxu0 0.0
    %286 = vmatpush1.msra.mxu0 0.0
    %287 = vmatprep.subr.mxu0 0.0
    %288 = vmatpush1.msra.mxu0 0.0
    %289 = vmatprep.subr.mxu0 0.0
    %290 = vmatpush1.msra.mxu0 0.0
    %291 = vmatprep.subr.mxu0 0.0
    %292 = vmatpush1.msra.mxu0 0.0
    %293 = vmatprep.subr.mxu0 0.0
    %294 = vmatpush1.msra.mxu0 0.0
    %295 = vmatprep.subr.mxu0 0.0
    %296 = vmatpush1.msra.mxu0 0.0
    %297 = vmatprep.subr.mxu0 0.0
    %298 = vmatpush1.msra.mxu0 0.0
    %299 = vmatprep.subr.mxu0 0.0
    %300 = vmatpush1.msra.mxu0 0.0
    %301 = vmatprep.subr.mxu0 0.0
    %302 = vmatpush1.msra.mxu0 0.0
    %303 = vmatprep.subr.mxu0 0.0
    %304 = vmatpush1.msra.mxu0 0.0
    %305 = vmatprep.subr.mxu0 0.0
    %306 = vmatpush1.msra.mxu0 0.0
    %307 = vmatprep.subr.mxu0 0.0
    %308 = vmatpush1.msra.mxu0 0.0
    %309 = vmatprep.subr.mxu0 0.0
    %310 = vmatpush1.msra.mxu0 0.0
    %311 = vmatprep.subr.mxu0 0.0
    %312 = vmatpush1.msra.mxu0 0.0
    %313 = vmatprep.subr.mxu0 0.0
    %314 = vmatpush1.msra.mxu0 0.0
    %315 = vmatprep.subr.mxu0 0.0
    %316 = vmatpush1.msra.mxu0 0.0
    %317 = vmatprep.subr.mxu0 0.0
    %318 = vmatpush1.msra.mxu0 0.0
    %319 = vmatprep.mubr.f32.mxu0 0.0
    %320 = vmatmul.mubr.f32.gmra.mrb[0].mxu0 %v119
    %v321 = vpop.f32.mrb[0].mxu0
    %v322 = vadd.f32 %v108, %v321
    %v323 = vpop.f32.mrb[0].mxu0
    %v324 = vadd.f32 %v112, %v323
    %325 = vmatprep.mubr.f32.mxu0 0.0
    %326 = vmatmul.mubr.f32.gmra.mrb[0].mxu0 %v122
    %v327 = vpop.f32.mrb[0].mxu0
    %v328 = vadd.f32 %v108, %v327
    %v329 = vpop.f32.mrb[0].mxu0
    %v330 = vadd.f32 %v112, %v329
    %331 = vmatprep.mubr.f32.mxu0 0.0
    %332 = vmatmul.mubr.f32.gmra.mrb[0].mxu0 %v125
    %v333 = vpop.f32.mrb[0].mxu0
    %v334 = vadd.f32 %v108, %v333
    %v335 = vpop.f32.mrb[0].mxu0
    %v336 = vadd.f32 %v112, %v335
    %337 = vmatprep.mubr.f32.mxu0 0.0
    %338 = vmatmul.mubr.f32.gmra.mrb[0].mxu0 %v128
    %v339 = vpop.f32.mrb[0].mxu0
    %v340 = vadd.f32 %v108, %v339
    %v341 = vpop.f32.mrb[0].mxu0
    %v342 = vadd.f32 %v112, %v341
    %343 = vmatprep.mubr.f32.mxu0 0.0
    %344 = vmatmul.mubr.f32.gmra.mrb[0].mxu0 %v131
    %v345 = vpop.f32.mrb[0].mxu0
    %v346 = vadd.f32 %v108, %v345
    %v347 = vpop.f32.mrb[0].mxu0
    %v348 = vadd.f32 %v112, %v347
    %349 = vmatprep.mubr.f32.mxu0 0.0
    %350 = vmatmul.mubr.f32.gmra.mrb[0].mxu0 %v134
    %v351 = vpop.f32.mrb[0].mxu0
    %v352 = vadd.f32 %v108, %v351
    %v353 = vpop.f32.mrb[0].mxu0
    %v354 = vadd.f32 %v112, %v353
    %355 = vmatprep.mubr.f32.mxu0 0.0
    %356 = vmatmul.mubr.f32.gmra.mrb[0].mxu0 %v137
    %v357 = vpop.f32.mrb[0].mxu0
    %v358 = vadd.f32 %v108, %v357
    %v359 = vpop.f32.mrb[0].mxu0
    %v360 = vadd.f32 %v112, %v359
    %361 = vmatprep.mubr.f32.mxu0 0.0
    %362 = vmatmul.mubr.f32.gmra.mrb[0].mxu0 %v140
    %v363 = vpop.f32.mrb[0].mxu0
    %v364 = vadd.f32 %v108, %v363
    %v365 = vpop.f32.mrb[0].mxu0
    %v366 = vadd.f32 %v112, %v365
    %367 = vdwg.mxu0
    %v368 = vld [vmem:[#allocation7] sm:$0xff]
    %v369 = vld [vmem:[#allocation7 + $0x8] sm:$0xff]
    %v370 = vld [vmem:[#allocation7 + $0x10] sm:$0xff]
    %v371 = vld [vmem:[#allocation7 + $0x18] sm:$0xff]
    %v372 = vld [vmem:[#allocation7 + $0x20] sm:$0xff]
    %v373 = vld [vmem:[#allocation7 + $0x28] sm:$0xff]
    %v374 = vld [vmem:[#allocation7 + $0x30] sm:$0xff]
    %v375 = vld [vmem:[#allocation7 + $0x38] sm:$0xff]
    %v376 = vld [vmem:[#allocation7 + $0x40] sm:$0xff]
    %v377 = vld [vmem:[#allocation7 + $0x48] sm:$0xff]
    %v378 = vld [vmem:[#allocation7 + $0x50] sm:$0xff]
    %v379 = vld [vmem:[#allocation7 + $0x58] sm:$0xff]
    %v380 = vld [vmem:[#allocation7 + $0x60] sm:$0xff]
    %v381 = vld [vmem:[#allocation7 + $0x68] sm:$0xff]
    %v382 = vld [vmem:[#allocation7 + $0x70] sm:$0xff]
    %v383 = vld [vmem:[#allocation7 + $0x78] sm:$0xff]
    %v384 = vld [vmem:[#allocation7 + $0x80] sm:$0xff]
    %v385 = vld [vmem:[#allocation7 + $0x88] sm:$0xff]
    %v386 = vld [vmem:[#allocation7 + $0x90] sm:$0xff]
    %v387 = vld [vmem:[#allocation7 + $0x98] sm:$0xff]
    %v388 = vld [vmem:[#allocation7 + $0xa0] sm:$0xff]
    %v389 = vld [vmem:[#allocation7 + $0xa8] sm:$0xff]
    %v390 = vld [vmem:[#allocation7 + $0xb0] sm:$0xff]
    %v391 = vld [vmem:[#allocation7 + $0xb8] sm:$0xff]
    %v392 = vld [vmem:[#allocation7 + $0xc0] sm:$0xff]
    %v393 = vld [vmem:[#allocation7 + $0xc8] sm:$0xff]
    %v394 = vld [vmem:[#allocation7 + $0xd0] sm:$0xff]
    %v395 = vld [vmem:[#allocation7 + $0xd8] sm:$0xff]
    %v396 = vld [vmem:[#allocation7 + $0xe0] sm:$0xff]
    %v397 = vld [vmem:[#allocation7 + $0xe8] sm:$0xff]
    %v398 = vld [vmem:[#allocation7 + $0xf0] sm:$0xff]
    %v399 = vld [vmem:[#allocation7 + $0xf8] sm:$0xff]
    %v400 = vld [vmem:[#allocation7 + $0x100] sm:$0xff]
    %v401 = vld [vmem:[#allocation7 + $0x108] sm:$0xff]
    %v402 = vld [vmem:[#allocation7 + $0x110] sm:$0xff]
    %v403 = vld [vmem:[#allocation7 + $0x118] sm:$0xff]
    %v404 = vld [vmem:[#allocation7 + $0x120] sm:$0xff]
    %v405 = vld [vmem:[#allocation7 + $0x128] sm:$0xff]
    %v406 = vld [vmem:[#allocation7 + $0x130] sm:$0xff]
    %v407 = vld [vmem:[#allocation7 + $0x138] sm:$0xff]
    %v408 = vld [vmem:[#allocation7 + $0x140] sm:$0xff]
    %v409 = vld [vmem:[#allocation7 + $0x148] sm:$0xff]
    %v410 = vld [vmem:[#allocation7 + $0x150] sm:$0xff]
    %v411 = vld [vmem:[#allocation7 + $0x158] sm:$0xff]
    %v412 = vld [vmem:[#allocation7 + $0x160] sm:$0xff]
    %v413 = vld [vmem:[#allocation7 + $0x168] sm:$0xff]
    %v414 = vld [vmem:[#allocation7 + $0x170] sm:$0xff]
    %v415 = vld [vmem:[#allocation7 + $0x178] sm:$0xff]
    %v416 = vld [vmem:[#allocation7 + $0x180] sm:$0xff]
    %v417 = vld [vmem:[#allocation7 + $0x188] sm:$0xff]
    %v418 = vld [vmem:[#allocation7 + $0x190] sm:$0xff]
    %v419 = vld [vmem:[#allocation7 + $0x198] sm:$0xff]
    %v420 = vld [vmem:[#allocation7 + $0x1a0] sm:$0xff]
    %v421 = vld [vmem:[#allocation7 + $0x1a8] sm:$0xff]
    %v422 = vld [vmem:[#allocation7 + $0x1b0] sm:$0xff]
    %v423 = vld [vmem:[#allocation7 + $0x1b8] sm:$0xff]
    %v424 = vld [vmem:[#allocation7 + $0x1c0] sm:$0xff]
    %v425 = vld [vmem:[#allocation7 + $0x1c8] sm:$0xff]
    %v426 = vld [vmem:[#allocation7 + $0x1d0] sm:$0xff]
    %v427 = vld [vmem:[#allocation7 + $0x1d8] sm:$0xff]
    %v428 = vld [vmem:[#allocation7 + $0x1e0] sm:$0xff]
    %v429 = vld [vmem:[#allocation7 + $0x1e8] sm:$0xff]
    %v430 = vld [vmem:[#allocation7 + $0x1f0] sm:$0xff]
    %v431 = vld [vmem:[#allocation7 + $0x1f8] sm:$0xff]
    %432 = vmatprep.subr.mxu0 %v369
    %433 = vmatpush1.msra.mxu0 %v368
    %434 = vmatprep.subr.mxu0 %v373
    %435 = vmatpush1.msra.mxu0 %v372
    %436 = vmatprep.subr.mxu0 %v377
    %437 = vmatpush1.msra.mxu0 %v376
    %438 = vmatprep.subr.mxu0 %v381
    %439 = vmatpush1.msra.mxu0 %v380
    %440 = vmatprep.subr.mxu0 %v385
    %441 = vmatpush1.msra.mxu0 %v384
    %442 = vmatprep.subr.mxu0 %v389
    %443 = vmatpush1.msra.mxu0 %v388
    %444 = vmatprep.subr.mxu0 %v393
    %445 = vmatpush1.msra.mxu0 %v392
    %446 = vmatprep.subr.mxu0 %v397
    %447 = vmatpush1.msra.mxu0 %v396
    %448 = vmatprep.subr.mxu0 %v401
    %449 = vmatpush1.msra.mxu0 %v400
    %450 = vmatprep.subr.mxu0 %v405
    %451 = vmatpush1.msra.mxu0 %v404
    %452 = vmatprep.subr.mxu0 %v409
    %453 = vmatpush1.msra.mxu0 %v408
    %454 = vmatprep.subr.mxu0 %v413
    %455 = vmatpush1.msra.mxu0 %v412
    %456 = vmatprep.subr.mxu0 %v417
    %457 = vmatpush1.msra.mxu0 %v416
    %458 = vmatprep.subr.mxu0 %v421
    %459 = vmatpush1.msra.mxu0 %v420
    %460 = vmatprep.subr.mxu0 %v425
    %461 = vmatpush1.msra.mxu0 %v424
    %462 = vmatprep.subr.mxu0 %v429
    %463 = vmatpush1.msra.mxu0 %v428
    %464 = vmatprep.subr.mxu0 0.0
    %465 = vmatpush1.msra.mxu0 0.0
    %466 = vmatprep.subr.mxu0 0.0
    %467 = vmatpush1.msra.mxu0 0.0
    %468 = vmatprep.subr.mxu0 0.0
    %469 = vmatpush1.msra.mxu0 0.0
    %470 = vmatprep.subr.mxu0 0.0
    %471 = vmatpush1.msra.mxu0 0.0
    %472 = vmatprep.subr.mxu0 0.0
    %473 = vmatpush1.msra.mxu0 0.0
    %474 = vmatprep.subr.mxu0 0.0
    %475 = vmatpush1.msra.mxu0 0.0
    %476 = vmatprep.subr.mxu0 0.0
    %477 = vmatpush1.msra.mxu0 0.0
    %478 = vmatprep.subr.mxu0 0.0
    %479 = vmatpush1.msra.mxu0 0.0
    %480 = vmatprep.subr.mxu0 0.0
    %481 = vmatpush1.msra.mxu0 0.0
    %482 = vmatprep.subr.mxu0 0.0
    %483 = vmatpush1.msra.mxu0 0.0
    %484 = vmatprep.subr.mxu0 0.0
    %485 = vmatpush1.msra.mxu0 0.0
    %486 = vmatprep.subr.mxu0 0.0
    %487 = vmatpush1.msra.mxu0 0.0
    %488 = vmatprep.subr.mxu0 0.0
    %489 = vmatpush1.msra.mxu0 0.0
    %490 = vmatprep.subr.mxu0 0.0
    %491 = vmatpush1.msra.mxu0 0.0
    %492 = vmatprep.subr.mxu0 0.0
    %493 = vmatpush1.msra.mxu0 0.0
    %494 = vmatprep.subr.mxu0 0.0
    %495 = vmatpush1.msra.mxu0 0.0
    %496 = vmatprep.mubr.f32.mxu0 0.0
    %497 = vmatmul.mubr.f32.gmra.mrb[0].mxu0 0.0
    %v498 = vpop.f32.mrb[0].mxu0
    %v499 = vadd.f32 0.0, %v498
    %v500 = vpop.f32.mrb[0].mxu0
    %v501 = vadd.f32 0.0, %v500
    %502 = vdwg.mxu0
    %503 = vmatprep.subr.mxu0 %v371
    %504 = vmatpush1.msra.mxu0 %v370
    %505 = vmatprep.subr.mxu0 %v375
    %506 = vmatpush1.msra.mxu0 %v374
    %507 = vmatprep.subr.mxu0 %v379
    %508 = vmatpush1.msra.mxu0 %v378
    %509 = vmatprep.subr.mxu0 %v383
    %510 = vmatpush1.msra.mxu0 %v382
    %511 = vmatprep.subr.mxu0 %v387
    %512 = vmatpush1.msra.mxu0 %v386
    %513 = vmatprep.subr.mxu0 %v391
    %514 = vmatpush1.msra.mxu0 %v390
    %515 = vmatprep.subr.mxu0 %v395
    %516 = vmatpush1.msra.mxu0 %v394
    %517 = vmatprep.subr.mxu0 %v399
    %518 = vmatpush1.msra.mxu0 %v398
    %519 = vmatprep.subr.mxu0 %v403
    %520 = vmatpush1.msra.mxu0 %v402
    %521 = vmatprep.subr.mxu0 %v407
    %522 = vmatpush1.msra.mxu0 %v406
    %523 = vmatprep.subr.mxu0 %v411
    %524 = vmatpush1.msra.mxu0 %v410
    %525 = vmatprep.subr.mxu0 %v415
    %526 = vmatpush1.msra.mxu0 %v414
    %527 = vmatprep.subr.mxu0 %v419
    %528 = vmatpush1.msra.mxu0 %v418
    %529 = vmatprep.subr.mxu0 %v423
    %530 = vmatpush1.msra.mxu0 %v422
    %531 = vmatprep.subr.mxu0 %v427
    %532 = vmatpush1.msra.mxu0 %v426
    %533 = vmatprep.subr.mxu0 %v431
    %534 = vmatpush1.msra.mxu0 %v430
    %535 = vmatprep.subr.mxu0 0.0
    %536 = vmatpush1.msra.mxu0 0.0
    %537 = vmatprep.subr.mxu0 0.0
    %538 = vmatpush1.msra.mxu0 0.0
    %539 = vmatprep.subr.mxu0 0.0
    %540 = vmatpush1.msra.mxu0 0.0
    %541 = vmatprep.subr.mxu0 0.0
    %542 = vmatpush1.msra.mxu0 0.0
    %543 = vmatprep.subr.mxu0 0.0
    %544 = vmatpush1.msra.mxu0 0.0
    %545 = vmatprep.subr.mxu0 0.0
    %546 = vmatpush1.msra.mxu0 0.0
    %547 = vmatprep.subr.mxu0 0.0
    %548 = vmatpush1.msra.mxu0 0.0
    %549 = vmatprep.subr.mxu0 0.0
    %550 = vmatpush1.msra.mxu0 0.0
    %551 = vmatprep.subr.mxu0 0.0
    %552 = vmatpush1.msra.mxu0 0.0
    %553 = vmatprep.subr.mxu0 0.0
    %554 = vmatpush1.msra.mxu0 0.0
    %555 = vmatprep.subr.mxu0 0.0
    %556 = vmatpush1.msra.mxu0 0.0
    %557 = vmatprep.subr.mxu0 0.0
    %558 = vmatpush1.msra.mxu0 0.0
    %559 = vmatprep.subr.mxu0 0.0
    %560 = vmatpush1.msra.mxu0 0.0
    %561 = vmatprep.subr.mxu0 0.0
    %562 = vmatpush1.msra.mxu0 0.0
    %563 = vmatprep.subr.mxu0 0.0
    %564 = vmatpush1.msra.mxu0 0.0
    %565 = vmatprep.subr.mxu0 0.0
    %566 = vmatpush1.msra.mxu0 0.0
    %567 = vmatprep.mubr.f32.mxu0 0.0
    %568 = vmatmul.mubr.f32.gmra.mrb[0].mxu0 0.0
    %v569 = vpop.f32.mrb[0].mxu0
    %v570 = vadd.f32 0.0, %v569
    %v571 = vpop.f32.mrb[0].mxu0
    %v572 = vadd.f32 0.0, %v571
    %573 = vdwg.mxu0
    %v574 = vadd.f32 %v209, %v499
    %v575 = vadd.f32 %v211, %v501
    %v576 = vadd.f32 %v322, %v570
    %v577 = vadd.f32 %v324, %v572
    %v578 = vxor.u32 %v574, 2147483648
    %v579 = vxor.u32 %v575, 2147483648
    %v580 = vxor.u32 %v577, 2147483648
    %v581 = vmul.f32 %v578, 1.442695
    %v582 = vpow.pop %v581
    %v583 = vmul.f32 %v579, 1.442695
    %v584 = vpow.pop %v583
    %v585 = vmul.f32 %v580, 1.442695
    %v586 = vpow.pop %v585
    %v587 = vadd.f32 %v582, 1.0
    %v588 = vadd.f32 %v584, 1.0
    %v589 = vadd.f32 %v586, 1.0
    %v590 = vrcp.pop %v587
    %v591 = vmul.f32 1.0, %v590
    %v592 = vrcp.pop %v588
    %v593 = vmul.f32 1.0, %v592
    %v594 = vrcp.pop %v589
    %v595 = vmul.f32 1.0, %v594
    %v596 = vtanh.pop %v576
    %v597 = vmul.f32 %v593, 0.0
    %v598 = vmul.f32 %v591, %v596
    %v599 = vadd.f32 %v597, %v598
    %v600 = vtanh.pop %v599
    %v601 = vmul.f32 %v595, %v600
    %602 = vmatprep.subr.mxu0 %v369
    %603 = vmatpush1.msra.mxu0 %v368
    %604 = vmatprep.subr.mxu0 %v373
    %605 = vmatpush1.msra.mxu0 %v372
    %606 = vmatprep.subr.mxu0 %v377
    %607 = vmatpush1.msra.mxu0 %v376
    %608 = vmatprep.subr.mxu0 %v381
    %609 = vmatpush1.msra.mxu0 %v380
    %610 = vmatprep.subr.mxu0 %v385
    %611 = vmatpush1.msra.mxu0 %v384
    %612 = vmatprep.subr.mxu0 %v389
    %613 = vmatpush1.msra.mxu0 %v388
    %614 = vmatprep.subr.mxu0 %v393
    %615 = vmatpush1.msra.mxu0 %v392
    %616 = vmatprep.subr.mxu0 %v397
    %617 = vmatpush1.msra.mxu0 %v396
    %618 = vmatprep.subr.mxu0 %v401
    %619 = vmatpush1.msra.mxu0 %v400
    %620 = vmatprep.subr.mxu0 %v405
    %621 = vmatpush1.msra.mxu0 %v404
    %622 = vmatprep.subr.mxu0 %v409
    %623 = vmatpush1.msra.mxu0 %v408
    %624 = vmatprep.subr.mxu0 %v413
    %625 = vmatpush1.msra.mxu0 %v412
    %626 = vmatprep.subr.mxu0 %v417
    %627 = vmatpush1.msra.mxu0 %v416
    %628 = vmatprep.subr.mxu0 %v421
    %629 = vmatpush1.msra.mxu0 %v420
    %630 = vmatprep.subr.mxu0 %v425
    %631 = vmatpush1.msra.mxu0 %v424
    %632 = vmatprep.subr.mxu0 %v429
    %633 = vmatpush1.msra.mxu0 %v428
    %634 = vmatprep.subr.mxu0 0.0
    %635 = vmatpush1.msra.mxu0 0.0
    %636 = vmatprep.subr.mxu0 0.0
    %637 = vmatpush1.msra.mxu0 0.0
    %638 = vmatprep.subr.mxu0 0.0
    %639 = vmatpush1.msra.mxu0 0.0
    %640 = vmatprep.subr.mxu0 0.0
    %641 = vmatpush1.msra.mxu0 0.0
    %642 = vmatprep.subr.mxu0 0.0
    %643 = vmatpush1.msra.mxu0 0.0
    %644 = vmatprep.subr.mxu0 0.0
    %645 = vmatpush1.msra.mxu0 0.0
    %646 = vmatprep.subr.mxu0 0.0
    %647 = vmatpush1.msra.mxu0 0.0
    %648 = vmatprep.subr.mxu0 0.0
    %649 = vmatpush1.msra.mxu0 0.0
    %650 = vmatprep.subr.mxu0 0.0
    %651 = vmatpush1.msra.mxu0 0.0
    %652 = vmatprep.subr.mxu0 0.0
    %653 = vmatpush1.msra.mxu0 0.0
    %654 = vmatprep.subr.mxu0 0.0
    %655 = vmatpush1.msra.mxu0 0.0
    %656 = vmatprep.subr.mxu0 0.0
    %657 = vmatpush1.msra.mxu0 0.0
    %658 = vmatprep.subr.mxu0 0.0
    %659 = vmatpush1.msra.mxu0 0.0
    %660 = vmatprep.subr.mxu0 0.0
    %661 = vmatpush1.msra.mxu0 0.0
    %662 = vmatprep.subr.mxu0 0.0
    %663 = vmatpush1.msra.mxu0 0.0
    %664 = vmatprep.subr.mxu0 0.0
    %665 = vmatpush1.msra.mxu0 0.0
    %666 = vmatprep.mubr.f32.mxu0 0.0
    %667 = vmatmul.mubr.f32.gmra.mrb[0].mxu0 %v601
    %v668 = vpop.f32.mrb[0].mxu0
    %v669 = vadd.f32 0.0, %v668
    %v670 = vpop.f32.mrb[0].mxu0
    %v671 = vadd.f32 0.0, %v670
    %672 = vdwg.mxu0
    %673 = vmatprep.subr.mxu0 %v371
    %674 = vmatpush1.msra.mxu0 %v370
    %675 = vmatprep.subr.mxu0 %v375
    %676 = vmatpush1.msra.mxu0 %v374
    %677 = vmatprep.subr.mxu0 %v379
    %678 = vmatpush1.msra.mxu0 %v378
    %679 = vmatprep.subr.mxu0 %v383
    %680 = vmatpush1.msra.mxu0 %v382
    %681 = vmatprep.subr.mxu0 %v387
    %682 = vmatpush1.msra.mxu0 %v386
    %683 = vmatprep.subr.mxu0 %v391
    %684 = vmatpush1.msra.mxu0 %v390
    %685 = vmatprep.subr.mxu0 %v395
    %686 = vmatpush1.msra.mxu0 %v394
    %687 = vmatprep.subr.mxu0 %v399
    %688 = vmatpush1.msra.mxu0 %v398
    %689 = vmatprep.subr.mxu0 %v403
    %690 = vmatpush1.msra.mxu0 %v402
    %691 = vmatprep.subr.mxu0 %v407
    %692 = vmatpush1.msra.mxu0 %v406
    %693 = vmatprep.subr.mxu0 %v411
    %694 = vmatpush1.msra.mxu0 %v410
    %695 = vmatprep.subr.mxu0 %v415
    %696 = vmatpush1.msra.mxu0 %v414
    %697 = vmatprep.subr.mxu0 %v419
    %698 = vmatpush1.msra.mxu0 %v418
    %699 = vmatprep.subr.mxu0 %v423
    %700 = vmatpush1.msra.mxu0 %v422
    %701 = vmatprep.subr.mxu0 %v427
    %702 = vmatpush1.msra.mxu0 %v426
    %703 = vmatprep.subr.mxu0 %v431
    %704 = vmatpush1.msra.mxu0 %v430
    %705 = vmatprep.subr.mxu0 0.0
    %706 = vmatpush1.msra.mxu0 0.0
    %707 = vmatprep.subr.mxu0 0.0
    %708 = vmatpush1.msra.mxu0 0.0
    %709 = vmatprep.subr.mxu0 0.0
    %710 = vmatpush1.msra.mxu0 0.0
    %711 = vmatprep.subr.mxu0 0.0
    %712 = vmatpush1.msra.mxu0 0.0
    %713 = vmatprep.subr.mxu0 0.0
    %714 = vmatpush1.msra.mxu0 0.0
    %715 = vmatprep.subr.mxu0 0.0
    %716 = vmatpush1.msra.mxu0 0.0
    %717 = vmatprep.subr.mxu0 0.0
    %718 = vmatpush1.msra.mxu0 0.0
    %719 = vmatprep.subr.mxu0 0.0
    %720 = vmatpush1.msra.mxu0 0.0
    %721 = vmatprep.subr.mxu0 0.0
    %722 = vmatpush1.msra.mxu0 0.0
    %723 = vmatprep.subr.mxu0 0.0
    %724 = vmatpush1.msra.mxu0 0.0
    %725 = vmatprep.subr.mxu0 0.0
    %726 = vmatpush1.msra.mxu0 0.0
    %727 = vmatprep.subr.mxu0 0.0
    %728 = vmatpush1.msra.mxu0 0.0
    %729 = vmatprep.subr.mxu0 0.0
    %730 = vmatpush1.msra.mxu0 0.0
    %731 = vmatprep.subr.mxu0 0.0
    %732 = vmatpush1.msra.mxu0 0.0
    %733 = vmatprep.subr.mxu0 0.0
    %734 = vmatpush1.msra.mxu0 0.0
    %735 = vmatprep.subr.mxu0 0.0
    %736 = vmatpush1.msra.mxu0 0.0
    %737 = vmatprep.mubr.f32.mxu0 0.0
    %738 = vmatmul.mubr.f32.gmra.mrb[0].mxu0 %v601
    %v739 = vpop.f32.mrb[0].mxu0
    %v740 = vadd.f32 0.0, %v739
    %v741 = vpop.f32.mrb[0].mxu0
    %v742 = vadd.f32 0.0, %v741
    %743 = vdwg.mxu0
    %v744 = vadd.f32 %v215, %v669
    %v745 = vadd.f32 %v217, %v671
    %v746 = vadd.f32 %v328, %v740
    %v747 = vadd.f32 %v330, %v742
    %v748 = vxor.u32 %v744, 2147483648
    %v749 = vxor.u32 %v745, 2147483648
    %v750 = vxor.u32 %v747, 2147483648
    %v751 = vmul.f32 %v748, 1.442695
    %v752 = vpow.pop %v751
    %v753 = vmul.f32 %v749, 1.442695
    %v754 = vpow.pop %v753
    %v755 = vmul.f32 %v750, 1.442695
    %v756 = vpow.pop %v755
    %v757 = vadd.f32 %v752, 1.0
    %v758 = vadd.f32 %v754, 1.0
    %v759 = vadd.f32 %v756, 1.0
    %v760 = vrcp.pop %v757
    %v761 = vmul.f32 1.0, %v760
    %v762 = vrcp.pop %v758
    %v763 = vmul.f32 1.0, %v762
    %v764 = vrcp.pop %v759
    %v765 = vmul.f32 1.0, %v764
    %v766 = vtanh.pop %v746
    %v767 = vmul.f32 %v763, %v599
    %v768 = vmul.f32 %v761, %v766
    %v769 = vadd.f32 %v767, %v768
    %v770 = vtanh.pop %v769
    %v771 = vmul.f32 %v765, %v770
    %772 = vmatprep.subr.mxu0 %v369
    %773 = vmatpush1.msra.mxu0 %v368
    %774 = vmatprep.subr.mxu0 %v373
    %775 = vmatpush1.msra.mxu0 %v372
    %776 = vmatprep.subr.mxu0 %v377
    %777 = vmatpush1.msra.mxu0 %v376
    %778 = vmatprep.subr.mxu0 %v381
    %779 = vmatpush1.msra.mxu0 %v380
    %780 = vmatprep.subr.mxu0 %v385
    %781 = vmatpush1.msra.mxu0 %v384
    %782 = vmatprep.subr.mxu0 %v389
    %783 = vmatpush1.msra.mxu0 %v388
    %784 = vmatprep.subr.mxu0 %v393
    %785 = vmatpush1.msra.mxu0 %v392
    %786 = vmatprep.subr.mxu0 %v397
    %787 = vmatpush1.msra.mxu0 %v396
    %788 = vmatprep.subr.mxu0 %v401
    %789 = vmatpush1.msra.mxu0 %v400
    %790 = vmatprep.subr.mxu0 %v405
    %791 = vmatpush1.msra.mxu0 %v404
    %792 = vmatprep.subr.mxu0 %v409
    %793 = vmatpush1.msra.mxu0 %v408
    %794 = vmatprep.subr.mxu0 %v413
    %795 = vmatpush1.msra.mxu0 %v412
    %796 = vmatprep.subr.mxu0 %v417
    %797 = vmatpush1.msra.mxu0 %v416
    %798 = vmatprep.subr.mxu0 %v421
    %799 = vmatpush1.msra.mxu0 %v420
    %800 = vmatprep.subr.mxu0 %v425
    %801 = vmatpush1.msra.mxu0 %v424
    %802 = vmatprep.subr.mxu0 %v429
    %803 = vmatpush1.msra.mxu0 %v428
    %804 = vmatprep.subr.mxu0 0.0
    %805 = vmatpush1.msra.mxu0 0.0
    %806 = vmatprep.subr.mxu0 0.0
    %807 = vmatpush1.msra.mxu0 0.0
    %808 = vmatprep.subr.mxu0 0.0
    %809 = vmatpush1.msra.mxu0 0.0
    %810 = vmatprep.subr.mxu0 0.0
    %811 = vmatpush1.msra.mxu0 0.0
    %812 = vmatprep.subr.mxu0 0.0
    %813 = vmatpush1.msra.mxu0 0.0
    %814 = vmatprep.subr.mxu0 0.0
    %815 = vmatpush1.msra.mxu0 0.0
    %816 = vmatprep.subr.mxu0 0.0
    %817 = vmatpush1.msra.mxu0 0.0
    %818 = vmatprep.subr.mxu0 0.0
    %819 = vmatpush1.msra.mxu0 0.0
    %820 = vmatprep.subr.mxu0 0.0
    %821 = vmatpush1.msra.mxu0 0.0
    %822 = vmatprep.subr.mxu0 0.0
    %823 = vmatpush1.msra.mxu0 0.0
    %824 = vmatprep.subr.mxu0 0.0
    %825 = vmatpush1.msra.mxu0 0.0
    %826 = vmatprep.subr.mxu0 0.0
    %827 = vmatpush1.msra.mxu0 0.0
    %828 = vmatprep.subr.mxu0 0.0
    %829 = vmatpush1.msra.mxu0 0.0
    %830 = vmatprep.subr.mxu0 0.0
    %831 = vmatpush1.msra.mxu0 0.0
    %832 = vmatprep.subr.mxu0 0.0
    %833 = vmatpush1.msra.mxu0 0.0
    %834 = vmatprep.subr.mxu0 0.0
    %835 = vmatpush1.msra.mxu0 0.0
    %836 = vmatprep.mubr.f32.mxu0 0.0
    %837 = vmatmul.mubr.f32.gmra.mrb[0].mxu0 %v771
    %v838 = vpop.f32.mrb[0].mxu0
    %v839 = vadd.f32 0.0, %v838
    %v840 = vpop.f32.mrb[0].mxu0
    %v841 = vadd.f32 0.0, %v840
    %842 = vdwg.mxu0
    %843 = vmatprep.subr.mxu0 %v371
    %844 = vmatpush1.msra.mxu0 %v370
    %845 = vmatprep.subr.mxu0 %v375
    %846 = vmatpush1.msra.mxu0 %v374
    %847 = vmatprep.subr.mxu0 %v379
    %848 = vmatpush1.msra.mxu0 %v378
    %849 = vmatprep.subr.mxu0 %v383
    %850 = vmatpush1.msra.mxu0 %v382
    %851 = vmatprep.subr.mxu0 %v387
    %852 = vmatpush1.msra.mxu0 %v386
    %853 = vmatprep.subr.mxu0 %v391
    %854 = vmatpush1.msra.mxu0 %v390
    %855 = vmatprep.subr.mxu0 %v395
    %856 = vmatpush1.msra.mxu0 %v394
    %857 = vmatprep.subr.mxu0 %v399
    %858 = vmatpush1.msra.mxu0 %v398
    %859 = vmatprep.subr.mxu0 %v403
    %860 = vmatpush1.msra.mxu0 %v402
    %861 = vmatprep.subr.mxu0 %v407
    %862 = vmatpush1.msra.mxu0 %v406
    %863 = vmatprep.subr.mxu0 %v411
    %864 = vmatpush1.msra.mxu0 %v410
    %865 = vmatprep.subr.mxu0 %v415
    %866 = vmatpush1.msra.mxu0 %v414
    %867 = vmatprep.subr.mxu0 %v419
    %868 = vmatpush1.msra.mxu0 %v418
    %869 = vmatprep.subr.mxu0 %v423
    %870 = vmatpush1.msra.mxu0 %v422
    %871 = vmatprep.subr.mxu0 %v427
    %872 = vmatpush1.msra.mxu0 %v426
    %873 = vmatprep.subr.mxu0 %v431
    %874 = vmatpush1.msra.mxu0 %v430
    %875 = vmatprep.subr.mxu0 0.0
    %876 = vmatpush1.msra.mxu0 0.0
    %877 = vmatprep.subr.mxu0 0.0
    %878 = vmatpush1.msra.mxu0 0.0
    %879 = vmatprep.subr.mxu0 0.0
    %880 = vmatpush1.msra.mxu0 0.0
    %881 = vmatprep.subr.mxu0 0.0
    %882 = vmatpush1.msra.mxu0 0.0
    %883 = vmatprep.subr.mxu0 0.0
    %884 = vmatpush1.msra.mxu0 0.0
    %885 = vmatprep.subr.mxu0 0.0
    %886 = vmatpush1.msra.mxu0 0.0
    %887 = vmatprep.subr.mxu0 0.0
    %888 = vmatpush1.msra.mxu0 0.0
    %889 = vmatprep.subr.mxu0 0.0
    %890 = vmatpush1.msra.mxu0 0.0
    %891 = vmatprep.subr.mxu0 0.0
    %892 = vmatpush1.msra.mxu0 0.0
    %893 = vmatprep.subr.mxu0 0.0
    %894 = vmatpush1.msra.mxu0 0.0
    %895 = vmatprep.subr.mxu0 0.0
    %896 = vmatpush1.msra.mxu0 0.0
    %897 = vmatprep.subr.mxu0 0.0
    %898 = vmatpush1.msra.mxu0 0.0
    %899 = vmatprep.subr.mxu0 0.0
    %900 = vmatpush1.msra.mxu0 0.0
    %901 = vmatprep.subr.mxu0 0.0
    %902 = vmatpush1.msra.mxu0 0.0
    %903 = vmatprep.subr.mxu0 0.0
    %904 = vmatpush1.msra.mxu0 0.0
    %905 = vmatprep.subr.mxu0 0.0
    %906 = vmatpush1.msra.mxu0 0.0
    %907 = vmatprep.mubr.f32.mxu0 0.0
    %908 = vmatmul.mubr.f32.gmra.mrb[0].mxu0 %v771
    %v909 = vpop.f32.mrb[0].mxu0
    %v910 = vadd.f32 0.0, %v909
    %v911 = vpop.f32.mrb[0].mxu0
    %v912 = vadd.f32 0.0, %v911
    %913 = vdwg.mxu0
    %v914 = vadd.f32 %v221, %v839
    %v915 = vadd.f32 %v223, %v841
    %v916 = vadd.f32 %v334, %v910
    %v917 = vadd.f32 %v336, %v912
    %v918 = vxor.u32 %v914, 2147483648
    %v919 = vxor.u32 %v915, 2147483648
    %v920 = vxor.u32 %v917, 2147483648
    %v921 = vmul.f32 %v918, 1.442695
    %v922 = vpow.pop %v921
    %v923 = vmul.f32 %v919, 1.442695
    %v924 = vpow.pop %v923
    %v925 = vmul.f32 %v920, 1.442695
    %v926 = vpow.pop %v925
    %v927 = vadd.f32 %v922, 1.0
    %v928 = vadd.f32 %v924, 1.0
    %v929 = vadd.f32 %v926, 1.0
    %v930 = vrcp.pop %v927
    %v931 = vmul.f32 1.0, %v930
    %v932 = vrcp.pop %v928
    %v933 = vmul.f32 1.0, %v932
    %v934 = vrcp.pop %v929
    %v935 = vmul.f32 1.0, %v934
    %v936 = vtanh.pop %v916
    %v937 = vmul.f32 %v933, %v769
    %v938 = vmul.f32 %v931, %v936
    %v939 = vadd.f32 %v937, %v938
    %v940 = vtanh.pop %v939
    %v941 = vmul.f32 %v935, %v940
    %942 = vmatprep.subr.mxu0 %v369
    %943 = vmatpush1.msra.mxu0 %v368
    %944 = vmatprep.subr.mxu0 %v373
    %945 = vmatpush1.msra.mxu0 %v372
    %946 = vmatprep.subr.mxu0 %v377
    %947 = vmatpush1.msra.mxu0 %v376
    %948 = vmatprep.subr.mxu0 %v381
    %949 = vmatpush1.msra.mxu0 %v380
    %950 = vmatprep.subr.mxu0 %v385
    %951 = vmatpush1.msra.mxu0 %v384
    %952 = vmatprep.subr.mxu0 %v389
    %953 = vmatpush1.msra.mxu0 %v388
    %954 = vmatprep.subr.mxu0 %v393
    %955 = vmatpush1.msra.mxu0 %v392
    %956 = vmatprep.subr.mxu0 %v397
    %957 = vmatpush1.msra.mxu0 %v396
    %958 = vmatprep.subr.mxu0 %v401
    %959 = vmatpush1.msra.mxu0 %v400
    %960 = vmatprep.subr.mxu0 %v405
    %961 = vmatpush1.msra.mxu0 %v404
    %962 = vmatprep.subr.mxu0 %v409
    %963 = vmatpush1.msra.mxu0 %v408
    %964 = vmatprep.subr.mxu0 %v413
    %965 = vmatpush1.msra.mxu0 %v412
    %966 = vmatprep.subr.mxu0 %v417
    %967 = vmatpush1.msra.mxu0 %v416
    %968 = vmatprep.subr.mxu0 %v421
    %969 = vmatpush1.msra.mxu0 %v420
    %970 = vmatprep.subr.mxu0 %v425
    %971 = vmatpush1.msra.mxu0 %v424
    %972 = vmatprep.subr.mxu0 %v429
    %973 = vmatpush1.msra.mxu0 %v428
    %974 = vmatprep.subr.mxu0 0.0
    %975 = vmatpush1.msra.mxu0 0.0
    %976 = vmatprep.subr.mxu0 0.0
    %977 = vmatpush1.msra.mxu0 0.0
    %978 = vmatprep.subr.mxu0 0.0
    %979 = vmatpush1.msra.mxu0 0.0
    %980 = vmatprep.subr.mxu0 0.0
    %981 = vmatpush1.msra.mxu0 0.0
    %982 = vmatprep.subr.mxu0 0.0
    %983 = vmatpush1.msra.mxu0 0.0
    %984 = vmatprep.subr.mxu0 0.0
    %985 = vmatpush1.msra.mxu0 0.0
    %986 = vmatprep.subr.mxu0 0.0
    %987 = vmatpush1.msra.mxu0 0.0
    %988 = vmatprep.subr.mxu0 0.0
    %989 = vmatpush1.msra.mxu0 0.0
    %990 = vmatprep.subr.mxu0 0.0
    %991 = vmatpush1.msra.mxu0 0.0
    %992 = vmatprep.subr.mxu0 0.0
    %993 = vmatpush1.msra.mxu0 0.0
    %994 = vmatprep.subr.mxu0 0.0
    %995 = vmatpush1.msra.mxu0 0.0
    %996 = vmatprep.subr.mxu0 0.0
    %997 = vmatpush1.msra.mxu0 0.0
    %998 = vmatprep.subr.mxu0 0.0
    %999 = vmatpush1.msra.mxu0 0.0
    %1000 = vmatprep.subr.mxu0 0.0
    %1001 = vmatpush1.msra.mxu0 0.0
    %1002 = vmatprep.subr.mxu0 0.0
    %1003 = vmatpush1.msra.mxu0 0.0
    %1004 = vmatprep.subr.mxu0 0.0
    %1005 = vmatpush1.msra.mxu0 0.0
    %1006 = vmatprep.mubr.f32.mxu0 0.0
    %1007 = vmatmul.mubr.f32.gmra.mrb[0].mxu0 %v941
    %v1008 = vpop.f32.mrb[0].mxu0
    %v1009 = vadd.f32 0.0, %v1008
    %v1010 = vpop.f32.mrb[0].mxu0
    %v1011 = vadd.f32 0.0, %v1010
    %1012 = vdwg.mxu0
    %1013 = vmatprep.subr.mxu0 %v371
    %1014 = vmatpush1.msra.mxu0 %v370
    %1015 = vmatprep.subr.mxu0 %v375
    %1016 = vmatpush1.msra.mxu0 %v374
    %1017 = vmatprep.subr.mxu0 %v379
    %1018 = vmatpush1.msra.mxu0 %v378
    %1019 = vmatprep.subr.mxu0 %v383
    %1020 = vmatpush1.msra.mxu0 %v382
    %1021 = vmatprep.subr.mxu0 %v387
    %1022 = vmatpush1.msra.mxu0 %v386
    %1023 = vmatprep.subr.mxu0 %v391
    %1024 = vmatpush1.msra.mxu0 %v390
    %1025 = vmatprep.subr.mxu0 %v395
    %1026 = vmatpush1.msra.mxu0 %v394
    %1027 = vmatprep.subr.mxu0 %v399
    %1028 = vmatpush1.msra.mxu0 %v398
    %1029 = vmatprep.subr.mxu0 %v403
    %1030 = vmatpush1.msra.mxu0 %v402
    %1031 = vmatprep.subr.mxu0 %v407
    %1032 = vmatpush1.msra.mxu0 %v406
    %1033 = vmatprep.subr.mxu0 %v411
    %1034 = vmatpush1.msra.mxu0 %v410
    %1035 = vmatprep.subr.mxu0 %v415
    %1036 = vmatpush1.msra.mxu0 %v414
    %1037 = vmatprep.subr.mxu0 %v419
    %1038 = vmatpush1.msra.mxu0 %v418
    %1039 = vmatprep.subr.mxu0 %v423
    %1040 = vmatpush1.msra.mxu0 %v422
    %1041 = vmatprep.subr.mxu0 %v427
    %1042 = vmatpush1.msra.mxu0 %v426
    %1043 = vmatprep.subr.mxu0 %v431
    %1044 = vmatpush1.msra.mxu0 %v430
    %1045 = vmatprep.subr.mxu0 0.0
    %1046 = vmatpush1.msra.mxu0 0.0
    %1047 = vmatprep.subr.mxu0 0.0
    %1048 = vmatpush1.msra.mxu0 0.0
    %1049 = vmatprep.subr.mxu0 0.0
    %1050 = vmatpush1.msra.mxu0 0.0
    %1051 = vmatprep.subr.mxu0 0.0
    %1052 = vmatpush1.msra.mxu0 0.0
    %1053 = vmatprep.subr.mxu0 0.0
    %1054 = vmatpush1.msra.mxu0 0.0
    %1055 = vmatprep.subr.mxu0 0.0
    %1056 = vmatpush1.msra.mxu0 0.0
    %1057 = vmatprep.subr.mxu0 0.0
    %1058 = vmatpush1.msra.mxu0 0.0
    %1059 = vmatprep.subr.mxu0 0.0
    %1060 = vmatpush1.msra.mxu0 0.0
    %1061 = vmatprep.subr.mxu0 0.0
    %1062 = vmatpush1.msra.mxu0 0.0
    %1063 = vmatprep.subr.mxu0 0.0
    %1064 = vmatpush1.msra.mxu0 0.0
    %1065 = vmatprep.subr.mxu0 0.0
    %1066 = vmatpush1.msra.mxu0 0.0
    %1067 = vmatprep.subr.mxu0 0.0
    %1068 = vmatpush1.msra.mxu0 0.0
    %1069 = vmatprep.subr.mxu0 0.0
    %1070 = vmatpush1.msra.mxu0 0.0
    %1071 = vmatprep.subr.mxu0 0.0
    %1072 = vmatpush1.msra.mxu0 0.0
    %1073 = vmatprep.subr.mxu0 0.0
    %1074 = vmatpush1.msra.mxu0 0.0
    %1075 = vmatprep.subr.mxu0 0.0
    %1076 = vmatpush1.msra.mxu0 0.0
    %1077 = vmatprep.mubr.f32.mxu0 0.0
    %1078 = vmatmul.mubr.f32.gmra.mrb[0].mxu0 %v941
    %v1079 = vpop.f32.mrb[0].mxu0
    %v1080 = vadd.f32 0.0, %v1079
    %v1081 = vpop.f32.mrb[0].mxu0
    %v1082 = vadd.f32 0.0, %v1081
    %1083 = vdwg.mxu0
    %v1084 = vadd.f32 %v227, %v1009
    %v1085 = vadd.f32 %v229, %v1011
    %v1086 = vadd.f32 %v340, %v1080
    %v1087 = vadd.f32 %v342, %v1082
    %v1088 = vxor.u32 %v1084, 2147483648
    %v1089 = vxor.u32 %v1085, 2147483648
    %v1090 = vxor.u32 %v1087, 2147483648
    %v1091 = vmul.f32 %v1088, 1.442695
    %v1092 = vpow.pop %v1091
    %v1093 = vmul.f32 %v1089, 1.442695
    %v1094 = vpow.pop %v1093
    %v1095 = vmul.f32 %v1090, 1.442695
    %v1096 = vpow.pop %v1095
    %v1097 = vadd.f32 %v1092, 1.0
    %v1098 = vadd.f32 %v1094, 1.0
    %v1099 = vadd.f32 %v1096, 1.0
    %v1100 = vrcp.pop %v1097
    %v1101 = vmul.f32 1.0, %v1100
    %v1102 = vrcp.pop %v1098
    %v1103 = vmul.f32 1.0, %v1102
    %v1104 = vrcp.pop %v1099
    %v1105 = vmul.f32 1.0, %v1104
    %v1106 = vtanh.pop %v1086
    %v1107 = vmul.f32 %v1103, %v939
    %v1108 = vmul.f32 %v1101, %v1106
    %v1109 = vadd.f32 %v1107, %v1108
    %v1110 = vtanh.pop %v1109
    %v1111 = vmul.f32 %v1105, %v1110
    %1112 = vmatprep.subr.mxu0 %v369
    %1113 = vmatpush1.msra.mxu0 %v368
    %1114 = vmatprep.subr.mxu0 %v373
    %1115 = vmatpush1.msra.mxu0 %v372
    %1116 = vmatprep.subr.mxu0 %v377
    %1117 = vmatpush1.msra.mxu0 %v376
    %1118 = vmatprep.subr.mxu0 %v381
    %1119 = vmatpush1.msra.mxu0 %v380
    %1120 = vmatprep.subr.mxu0 %v385
    %1121 = vmatpush1.msra.mxu0 %v384
    %1122 = vmatprep.subr.mxu0 %v389
    %1123 = vmatpush1.msra.mxu0 %v388
    %1124 = vmatprep.subr.mxu0 %v393
    %1125 = vmatpush1.msra.mxu0 %v392
    %1126 = vmatprep.subr.mxu0 %v397
    %1127 = vmatpush1.msra.mxu0 %v396
    %1128 = vmatprep.subr.mxu0 %v401
    %1129 = vmatpush1.msra.mxu0 %v400
    %1130 = vmatprep.subr.mxu0 %v405
    %1131 = vmatpush1.msra.mxu0 %v404
    %1132 = vmatprep.subr.mxu0 %v409
    %1133 = vmatpush1.msra.mxu0 %v408
    %1134 = vmatprep.subr.mxu0 %v413
    %1135 = vmatpush1.msra.mxu0 %v412
    %1136 = vmatprep.subr.mxu0 %v417
    %1137 = vmatpush1.msra.mxu0 %v416
    %1138 = vmatprep.subr.mxu0 %v421
    %1139 = vmatpush1.msra.mxu0 %v420
    %1140 = vmatprep.subr.mxu0 %v425
    %1141 = vmatpush1.msra.mxu0 %v424
    %1142 = vmatprep.subr.mxu0 %v429
    %1143 = vmatpush1.msra.mxu0 %v428
    %1144 = vmatprep.subr.mxu0 0.0
    %1145 = vmatpush1.msra.mxu0 0.0
    %1146 = vmatprep.subr.mxu0 0.0
    %1147 = vmatpush1.msra.mxu0 0.0
    %1148 = vmatprep.subr.mxu0 0.0
    %1149 = vmatpush1.msra.mxu0 0.0
    %1150 = vmatprep.subr.mxu0 0.0
    %1151 = vmatpush1.msra.mxu0 0.0
    %1152 = vmatprep.subr.mxu0 0.0
    %1153 = vmatpush1.msra.mxu0 0.0
    %1154 = vmatprep.subr.mxu0 0.0
    %1155 = vmatpush1.msra.mxu0 0.0
    %1156 = vmatprep.subr.mxu0 0.0
    %1157 = vmatpush1.msra.mxu0 0.0
    %1158 = vmatprep.subr.mxu0 0.0
    %1159 = vmatpush1.msra.mxu0 0.0
    %1160 = vmatprep.subr.mxu0 0.0
    %1161 = vmatpush1.msra.mxu0 0.0
    %1162 = vmatprep.subr.mxu0 0.0
    %1163 = vmatpush1.msra.mxu0 0.0
    %1164 = vmatprep.subr.mxu0 0.0
    %1165 = vmatpush1.msra.mxu0 0.0
    %1166 = vmatprep.subr.mxu0 0.0
    %1167 = vmatpush1.msra.mxu0 0.0
    %1168 = vmatprep.subr.mxu0 0.0
    %1169 = vmatpush1.msra.mxu0 0.0
    %1170 = vmatprep.subr.mxu0 0.0
    %1171 = vmatpush1.msra.mxu0 0.0
    %1172 = vmatprep.subr.mxu0 0.0
    %1173 = vmatpush1.msra.mxu0 0.0
    %1174 = vmatprep.subr.mxu0 0.0
    %1175 = vmatpush1.msra.mxu0 0.0
    %1176 = vmatprep.mubr.f32.mxu0 0.0
    %1177 = vmatmul.mubr.f32.gmra.mrb[0].mxu0 %v1111
    %v1178 = vpop.f32.mrb[0].mxu0
    %v1179 = vadd.f32 0.0, %v1178
    %v1180 = vpop.f32.mrb[0].mxu0
    %v1181 = vadd.f32 0.0, %v1180
    %1182 = vdwg.mxu0
    %1183 = vmatprep.subr.mxu0 %v371
    %1184 = vmatpush1.msra.mxu0 %v370
    %1185 = vmatprep.subr.mxu0 %v375
    %1186 = vmatpush1.msra.mxu0 %v374
    %1187 = vmatprep.subr.mxu0 %v379
    %1188 = vmatpush1.msra.mxu0 %v378
    %1189 = vmatprep.subr.mxu0 %v383
    %1190 = vmatpush1.msra.mxu0 %v382
    %1191 = vmatprep.subr.mxu0 %v387
    %1192 = vmatpush1.msra.mxu0 %v386
    %1193 = vmatprep.subr.mxu0 %v391
    %1194 = vmatpush1.msra.mxu0 %v390
    %1195 = vmatprep.subr.mxu0 %v395
    %1196 = vmatpush1.msra.mxu0 %v394
    %1197 = vmatprep.subr.mxu0 %v399
    %1198 = vmatpush1.msra.mxu0 %v398
    %1199 = vmatprep.subr.mxu0 %v403
    %1200 = vmatpush1.msra.mxu0 %v402
    %1201 = vmatprep.subr.mxu0 %v407
    %1202 = vmatpush1.msra.mxu0 %v406
    %1203 = vmatprep.subr.mxu0 %v411
    %1204 = vmatpush1.msra.mxu0 %v410
    %1205 = vmatprep.subr.mxu0 %v415
    %1206 = vmatpush1.msra.mxu0 %v414
    %1207 = vmatprep.subr.mxu0 %v419
    %1208 = vmatpush1.msra.mxu0 %v418
    %1209 = vmatprep.subr.mxu0 %v423
    %1210 = vmatpush1.msra.mxu0 %v422
    %1211 = vmatprep.subr.mxu0 %v427
    %1212 = vmatpush1.msra.mxu0 %v426
    %1213 = vmatprep.subr.mxu0 %v431
    %1214 = vmatpush1.msra.mxu0 %v430
    %1215 = vmatprep.subr.mxu0 0.0
    %1216 = vmatpush1.msra.mxu0 0.0
    %1217 = vmatprep.subr.mxu0 0.0
    %1218 = vmatpush1.msra.mxu0 0.0
    %1219 = vmatprep.subr.mxu0 0.0
    %1220 = vmatpush1.msra.mxu0 0.0
    %1221 = vmatprep.subr.mxu0 0.0
    %1222 = vmatpush1.msra.mxu0 0.0
    %1223 = vmatprep.subr.mxu0 0.0
    %1224 = vmatpush1.msra.mxu0 0.0
    %1225 = vmatprep.subr.mxu0 0.0
    %1226 = vmatpush1.msra.mxu0 0.0
    %1227 = vmatprep.subr.mxu0 0.0
    %1228 = vmatpush1.msra.mxu0 0.0
    %1229 = vmatprep.subr.mxu0 0.0
    %1230 = vmatpush1.msra.mxu0 0.0
    %1231 = vmatprep.subr.mxu0 0.0
    %1232 = vmatpush1.msra.mxu0 0.0
    %1233 = vmatprep.subr.mxu0 0.0
    %1234 = vmatpush1.msra.mxu0 0.0
    %1235 = vmatprep.subr.mxu0 0.0
    %1236 = vmatpush1.msra.mxu0 0.0
    %1237 = vmatprep.subr.mxu0 0.0
    %1238 = vmatpush1.msra.mxu0 0.0
    %1239 = vmatprep.subr.mxu0 0.0
    %1240 = vmatpush1.msra.mxu0 0.0
    %1241 = vmatprep.subr.mxu0 0.0
    %1242 = vmatpush1.msra.mxu0 0.0
    %1243 = vmatprep.subr.mxu0 0.0
    %1244 = vmatpush1.msra.mxu0 0.0
    %1245 = vmatprep.subr.mxu0 0.0
    %1246 = vmatpush1.msra.mxu0 0.0
    %1247 = vmatprep.mubr.f32.mxu0 0.0
    %1248 = vmatmul.mubr.f32.gmra.mrb[0].mxu0 %v1111
    %v1249 = vpop.f32.mrb[0].mxu0
    %v1250 = vadd.f32 0.0, %v1249
    %v1251 = vpop.f32.mrb[0].mxu0
    %v1252 = vadd.f32 0.0, %v1251
    %1253 = vdwg.mxu0
    %v1254 = vadd.f32 %v233, %v1179
    %v1255 = vadd.f32 %v235, %v1181
    %v1256 = vadd.f32 %v346, %v1250
    %v1257 = vadd.f32 %v348, %v1252
    %v1258 = vxor.u32 %v1254, 2147483648
    %v1259 = vxor.u32 %v1255, 2147483648
    %v1260 = vxor.u32 %v1257, 2147483648
    %v1261 = vmul.f32 %v1258, 1.442695
    %v1262 = vpow.pop %v1261
    %v1263 = vmul.f32 %v1259, 1.442695
    %v1264 = vpow.pop %v1263
    %v1265 = vmul.f32 %v1260, 1.442695
    %v1266 = vpow.pop %v1265
    %v1267 = vadd.f32 %v1262, 1.0
    %v1268 = vadd.f32 %v1264, 1.0
    %v1269 = vadd.f32 %v1266, 1.0
    %v1270 = vrcp.pop %v1267
    %v1271 = vmul.f32 1.0, %v1270
    %v1272 = vrcp.pop %v1268
    %v1273 = vmul.f32 1.0, %v1272
    %v1274 = vrcp.pop %v1269
    %v1275 = vmul.f32 1.0, %v1274
    %v1276 = vtanh.pop %v1256
    %v1277 = vmul.f32 %v1273, %v1109
    %v1278 = vmul.f32 %v1271, %v1276
    %v1279 = vadd.f32 %v1277, %v1278
    %v1280 = vtanh.pop %v1279
    %v1281 = vmul.f32 %v1275, %v1280
    %1282 = vmatprep.subr.mxu0 %v369
    %1283 = vmatpush1.msra.mxu0 %v368
    %1284 = vmatprep.subr.mxu0 %v373
    %1285 = vmatpush1.msra.mxu0 %v372
    %1286 = vmatprep.subr.mxu0 %v377
    %1287 = vmatpush1.msra.mxu0 %v376
    %1288 = vmatprep.subr.mxu0 %v381
    %1289 = vmatpush1.msra.mxu0 %v380
    %1290 = vmatprep.subr.mxu0 %v385
    %1291 = vmatpush1.msra.mxu0 %v384
    %1292 = vmatprep.subr.mxu0 %v389
    %1293 = vmatpush1.msra.mxu0 %v388
    %1294 = vmatprep.subr.mxu0 %v393
    %1295 = vmatpush1.msra.mxu0 %v392
    %1296 = vmatprep.subr.mxu0 %v397
    %1297 = vmatpush1.msra.mxu0 %v396
    %1298 = vmatprep.subr.mxu0 %v401
    %1299 = vmatpush1.msra.mxu0 %v400
    %1300 = vmatprep.subr.mxu0 %v405
    %1301 = vmatpush1.msra.mxu0 %v404
    %1302 = vmatprep.subr.mxu0 %v409
    %1303 = vmatpush1.msra.mxu0 %v408
    %1304 = vmatprep.subr.mxu0 %v413
    %1305 = vmatpush1.msra.mxu0 %v412
    %1306 = vmatprep.subr.mxu0 %v417
    %1307 = vmatpush1.msra.mxu0 %v416
    %1308 = vmatprep.subr.mxu0 %v421
    %1309 = vmatpush1.msra.mxu0 %v420
    %1310 = vmatprep.subr.mxu0 %v425
    %1311 = vmatpush1.msra.mxu0 %v424
    %1312 = vmatprep.subr.mxu0 %v429
    %1313 = vmatpush1.msra.mxu0 %v428
    %1314 = vmatprep.subr.mxu0 0.0
    %1315 = vmatpush1.msra.mxu0 0.0
    %1316 = vmatprep.subr.mxu0 0.0
    %1317 = vmatpush1.msra.mxu0 0.0
    %1318 = vmatprep.subr.mxu0 0.0
    %1319 = vmatpush1.msra.mxu0 0.0
    %1320 = vmatprep.subr.mxu0 0.0
    %1321 = vmatpush1.msra.mxu0 0.0
    %1322 = vmatprep.subr.mxu0 0.0
    %1323 = vmatpush1.msra.mxu0 0.0
    %1324 = vmatprep.subr.mxu0 0.0
    %1325 = vmatpush1.msra.mxu0 0.0
    %1326 = vmatprep.subr.mxu0 0.0
    %1327 = vmatpush1.msra.mxu0 0.0
    %1328 = vmatprep.subr.mxu0 0.0
    %1329 = vmatpush1.msra.mxu0 0.0
    %1330 = vmatprep.subr.mxu0 0.0
    %1331 = vmatpush1.msra.mxu0 0.0
    %1332 = vmatprep.subr.mxu0 0.0
    %1333 = vmatpush1.msra.mxu0 0.0
    %1334 = vmatprep.subr.mxu0 0.0
    %1335 = vmatpush1.msra.mxu0 0.0
    %1336 = vmatprep.subr.mxu0 0.0
    %1337 = vmatpush1.msra.mxu0 0.0
    %1338 = vmatprep.subr.mxu0 0.0
    %1339 = vmatpush1.msra.mxu0 0.0
    %1340 = vmatprep.subr.mxu0 0.0
    %1341 = vmatpush1.msra.mxu0 0.0
    %1342 = vmatprep.subr.mxu0 0.0
    %1343 = vmatpush1.msra.mxu0 0.0
    %1344 = vmatprep.subr.mxu0 0.0
    %1345 = vmatpush1.msra.mxu0 0.0
    %1346 = vmatprep.mubr.f32.mxu0 0.0
    %1347 = vmatmul.mubr.f32.gmra.mrb[0].mxu0 %v1281
    %v1348 = vpop.f32.mrb[0].mxu0
    %v1349 = vadd.f32 0.0, %v1348
    %v1350 = vpop.f32.mrb[0].mxu0
    %v1351 = vadd.f32 0.0, %v1350
    %1352 = vdwg.mxu0
    %1353 = vmatprep.subr.mxu0 %v371
    %1354 = vmatpush1.msra.mxu0 %v370
    %1355 = vmatprep.subr.mxu0 %v375
    %1356 = vmatpush1.msra.mxu0 %v374
    %1357 = vmatprep.subr.mxu0 %v379
    %1358 = vmatpush1.msra.mxu0 %v378
    %1359 = vmatprep.subr.mxu0 %v383
    %1360 = vmatpush1.msra.mxu0 %v382
    %1361 = vmatprep.subr.mxu0 %v387
    %1362 = vmatpush1.msra.mxu0 %v386
    %1363 = vmatprep.subr.mxu0 %v391
    %1364 = vmatpush1.msra.mxu0 %v390
    %1365 = vmatprep.subr.mxu0 %v395
    %1366 = vmatpush1.msra.mxu0 %v394
    %1367 = vmatprep.subr.mxu0 %v399
    %1368 = vmatpush1.msra.mxu0 %v398
    %1369 = vmatprep.subr.mxu0 %v403
    %1370 = vmatpush1.msra.mxu0 %v402
    %1371 = vmatprep.subr.mxu0 %v407
    %1372 = vmatpush1.msra.mxu0 %v406
    %1373 = vmatprep.subr.mxu0 %v411
    %1374 = vmatpush1.msra.mxu0 %v410
    %1375 = vmatprep.subr.mxu0 %v415
    %1376 = vmatpush1.msra.mxu0 %v414
    %1377 = vmatprep.subr.mxu0 %v419
    %1378 = vmatpush1.msra.mxu0 %v418
    %1379 = vmatprep.subr.mxu0 %v423
    %1380 = vmatpush1.msra.mxu0 %v422
    %1381 = vmatprep.subr.mxu0 %v427
    %1382 = vmatpush1.msra.mxu0 %v426
    %1383 = vmatprep.subr.mxu0 %v431
    %1384 = vmatpush1.msra.mxu0 %v430
    %1385 = vmatprep.subr.mxu0 0.0
    %1386 = vmatpush1.msra.mxu0 0.0
    %1387 = vmatprep.subr.mxu0 0.0
    %1388 = vmatpush1.msra.mxu0 0.0
    %1389 = vmatprep.subr.mxu0 0.0
    %1390 = vmatpush1.msra.mxu0 0.0
    %1391 = vmatprep.subr.mxu0 0.0
    %1392 = vmatpush1.msra.mxu0 0.0
    %1393 = vmatprep.subr.mxu0 0.0
    %1394 = vmatpush1.msra.mxu0 0.0
    %1395 = vmatprep.subr.mxu0 0.0
    %1396 = vmatpush1.msra.mxu0 0.0
    %1397 = vmatprep.subr.mxu0 0.0
    %1398 = vmatpush1.msra.mxu0 0.0
    %1399 = vmatprep.subr.mxu0 0.0
    %1400 = vmatpush1.msra.mxu0 0.0
    %1401 = vmatprep.subr.mxu0 0.0
    %1402 = vmatpush1.msra.mxu0 0.0
    %1403 = vmatprep.subr.mxu0 0.0
    %1404 = vmatpush1.msra.mxu0 0.0
    %1405 = vmatprep.subr.mxu0 0.0
    %1406 = vmatpush1.msra.mxu0 0.0
    %1407 = vmatprep.subr.mxu0 0.0
    %1408 = vmatpush1.msra.mxu0 0.0
    %1409 = vmatprep.subr.mxu0 0.0
    %1410 = vmatpush1.msra.mxu0 0.0
    %1411 = vmatprep.subr.mxu0 0.0
    %1412 = vmatpush1.msra.mxu0 0.0
    %1413 = vmatprep.subr.mxu0 0.0
    %1414 = vmatpush1.msra.mxu0 0.0
    %1415 = vmatprep.subr.mxu0 0.0
    %1416 = vmatpush1.msra.mxu0 0.0
    %1417 = vmatprep.mubr.f32.mxu0 0.0
    %1418 = vmatmul.mubr.f32.gmra.mrb[0].mxu0 %v1281
    %v1419 = vpop.f32.mrb[0].mxu0
    %v1420 = vadd.f32 0.0, %v1419
    %v1421 = vpop.f32.mrb[0].mxu0
    %v1422 = vadd.f32 0.0, %v1421
    %1423 = vdwg.mxu0
    %v1424 = vadd.f32 %v239, %v1349
    %v1425 = vadd.f32 %v241, %v1351
    %v1426 = vadd.f32 %v352, %v1420
    %v1427 = vadd.f32 %v354, %v1422
    %v1428 = vxor.u32 %v1424, 2147483648
    %v1429 = vxor.u32 %v1425, 2147483648
    %v1430 = vxor.u32 %v1427, 2147483648
    %v1431 = vmul.f32 %v1428, 1.442695
    %v1432 = vpow.pop %v1431
    %v1433 = vmul.f32 %v1429, 1.442695
    %v1434 = vpow.pop %v1433
    %v1435 = vmul.f32 %v1430, 1.442695
    %v1436 = vpow.pop %v1435
    %v1437 = vadd.f32 %v1432, 1.0
    %v1438 = vadd.f32 %v1434, 1.0
    %v1439 = vadd.f32 %v1436, 1.0
    %v1440 = vrcp.pop %v1437
    %v1441 = vmul.f32 1.0, %v1440
    %v1442 = vrcp.pop %v1438
    %v1443 = vmul.f32 1.0, %v1442
    %v1444 = vrcp.pop %v1439
    %v1445 = vmul.f32 1.0, %v1444
    %v1446 = vtanh.pop %v1426
    %v1447 = vmul.f32 %v1443, %v1279
    %v1448 = vmul.f32 %v1441, %v1446
    %v1449 = vadd.f32 %v1447, %v1448
    %v1450 = vtanh.pop %v1449
    %v1451 = vmul.f32 %v1445, %v1450
    %1452 = vmatprep.subr.mxu0 %v369
    %1453 = vmatpush1.msra.mxu0 %v368
    %1454 = vmatprep.subr.mxu0 %v373
    %1455 = vmatpush1.msra.mxu0 %v372
    %1456 = vmatprep.subr.mxu0 %v377
    %1457 = vmatpush1.msra.mxu0 %v376
    %1458 = vmatprep.subr.mxu0 %v381
    %1459 = vmatpush1.msra.mxu0 %v380
    %1460 = vmatprep.subr.mxu0 %v385
    %1461 = vmatpush1.msra.mxu0 %v384
    %1462 = vmatprep.subr.mxu0 %v389
    %1463 = vmatpush1.msra.mxu0 %v388
    %1464 = vmatprep.subr.mxu0 %v393
    %1465 = vmatpush1.msra.mxu0 %v392
    %1466 = vmatprep.subr.mxu0 %v397
    %1467 = vmatpush1.msra.mxu0 %v396
    %1468 = vmatprep.subr.mxu0 %v401
    %1469 = vmatpush1.msra.mxu0 %v400
    %1470 = vmatprep.subr.mxu0 %v405
    %1471 = vmatpush1.msra.mxu0 %v404
    %1472 = vmatprep.subr.mxu0 %v409
    %1473 = vmatpush1.msra.mxu0 %v408
    %1474 = vmatprep.subr.mxu0 %v413
    %1475 = vmatpush1.msra.mxu0 %v412
    %1476 = vmatprep.subr.mxu0 %v417
    %1477 = vmatpush1.msra.mxu0 %v416
    %1478 = vmatprep.subr.mxu0 %v421
    %1479 = vmatpush1.msra.mxu0 %v420
    %1480 = vmatprep.subr.mxu0 %v425
    %1481 = vmatpush1.msra.mxu0 %v424
    %1482 = vmatprep.subr.mxu0 %v429
    %1483 = vmatpush1.msra.mxu0 %v428
    %1484 = vmatprep.subr.mxu0 0.0
    %1485 = vmatpush1.msra.mxu0 0.0
    %1486 = vmatprep.subr.mxu0 0.0
    %1487 = vmatpush1.msra.mxu0 0.0
    %1488 = vmatprep.subr.mxu0 0.0
    %1489 = vmatpush1.msra.mxu0 0.0
    %1490 = vmatprep.subr.mxu0 0.0
    %1491 = vmatpush1.msra.mxu0 0.0
    %1492 = vmatprep.subr.mxu0 0.0
    %1493 = vmatpush1.msra.mxu0 0.0
    %1494 = vmatprep.subr.mxu0 0.0
    %1495 = vmatpush1.msra.mxu0 0.0
    %1496 = vmatprep.subr.mxu0 0.0
    %1497 = vmatpush1.msra.mxu0 0.0
    %1498 = vmatprep.subr.mxu0 0.0
    %1499 = vmatpush1.msra.mxu0 0.0
    %1500 = vmatprep.subr.mxu0 0.0
    %1501 = vmatpush1.msra.mxu0 0.0
    %1502 = vmatprep.subr.mxu0 0.0
    %1503 = vmatpush1.msra.mxu0 0.0
    %1504 = vmatprep.subr.mxu0 0.0
    %1505 = vmatpush1.msra.mxu0 0.0
    %1506 = vmatprep.subr.mxu0 0.0
    %1507 = vmatpush1.msra.mxu0 0.0
    %1508 = vmatprep.subr.mxu0 0.0
    %1509 = vmatpush1.msra.mxu0 0.0
    %1510 = vmatprep.subr.mxu0 0.0
    %1511 = vmatpush1.msra.mxu0 0.0
    %1512 = vmatprep.subr.mxu0 0.0
    %1513 = vmatpush1.msra.mxu0 0.0
    %1514 = vmatprep.subr.mxu0 0.0
    %1515 = vmatpush1.msra.mxu0 0.0
    %1516 = vmatprep.mubr.f32.mxu0 0.0
    %1517 = vmatmul.mubr.f32.gmra.mrb[0].mxu0 %v1451
    %v1518 = vpop.f32.mrb[0].mxu0
    %v1519 = vadd.f32 0.0, %v1518
    %v1520 = vpop.f32.mrb[0].mxu0
    %v1521 = vadd.f32 0.0, %v1520
    %1522 = vdwg.mxu0
    %1523 = vmatprep.subr.mxu0 %v371
    %1524 = vmatpush1.msra.mxu0 %v370
    %1525 = vmatprep.subr.mxu0 %v375
    %1526 = vmatpush1.msra.mxu0 %v374
    %1527 = vmatprep.subr.mxu0 %v379
    %1528 = vmatpush1.msra.mxu0 %v378
    %1529 = vmatprep.subr.mxu0 %v383
    %1530 = vmatpush1.msra.mxu0 %v382
    %1531 = vmatprep.subr.mxu0 %v387
    %1532 = vmatpush1.msra.mxu0 %v386
    %1533 = vmatprep.subr.mxu0 %v391
    %1534 = vmatpush1.msra.mxu0 %v390
    %1535 = vmatprep.subr.mxu0 %v395
    %1536 = vmatpush1.msra.mxu0 %v394
    %1537 = vmatprep.subr.mxu0 %v399
    %1538 = vmatpush1.msra.mxu0 %v398
    %1539 = vmatprep.subr.mxu0 %v403
    %1540 = vmatpush1.msra.mxu0 %v402
    %1541 = vmatprep.subr.mxu0 %v407
    %1542 = vmatpush1.msra.mxu0 %v406
    %1543 = vmatprep.subr.mxu0 %v411
    %1544 = vmatpush1.msra.mxu0 %v410
    %1545 = vmatprep.subr.mxu0 %v415
    %1546 = vmatpush1.msra.mxu0 %v414
    %1547 = vmatprep.subr.mxu0 %v419
    %1548 = vmatpush1.msra.mxu0 %v418
    %1549 = vmatprep.subr.mxu0 %v423
    %1550 = vmatpush1.msra.mxu0 %v422
    %1551 = vmatprep.subr.mxu0 %v427
    %1552 = vmatpush1.msra.mxu0 %v426
    %1553 = vmatprep.subr.mxu0 %v431
    %1554 = vmatpush1.msra.mxu0 %v430
    %1555 = vmatprep.subr.mxu0 0.0
    %1556 = vmatpush1.msra.mxu0 0.0
    %1557 = vmatprep.subr.mxu0 0.0
    %1558 = vmatpush1.msra.mxu0 0.0
    %1559 = vmatprep.subr.mxu0 0.0
    %1560 = vmatpush1.msra.mxu0 0.0
    %1561 = vmatprep.subr.mxu0 0.0
    %1562 = vmatpush1.msra.mxu0 0.0
    %1563 = vmatprep.subr.mxu0 0.0
    %1564 = vmatpush1.msra.mxu0 0.0
    %1565 = vmatprep.subr.mxu0 0.0
    %1566 = vmatpush1.msra.mxu0 0.0
    %1567 = vmatprep.subr.mxu0 0.0
    %1568 = vmatpush1.msra.mxu0 0.0
    %1569 = vmatprep.subr.mxu0 0.0
    %1570 = vmatpush1.msra.mxu0 0.0
    %1571 = vmatprep.subr.mxu0 0.0
    %1572 = vmatpush1.msra.mxu0 0.0
    %1573 = vmatprep.subr.mxu0 0.0
    %1574 = vmatpush1.msra.mxu0 0.0
    %1575 = vmatprep.subr.mxu0 0.0
    %1576 = vmatpush1.msra.mxu0 0.0
    %1577 = vmatprep.subr.mxu0 0.0
    %1578 = vmatpush1.msra.mxu0 0.0
    %1579 = vmatprep.subr.mxu0 0.0
    %1580 = vmatpush1.msra.mxu0 0.0
    %1581 = vmatprep.subr.mxu0 0.0
    %1582 = vmatpush1.msra.mxu0 0.0
    %1583 = vmatprep.subr.mxu0 0.0
    %1584 = vmatpush1.msra.mxu0 0.0
    %1585 = vmatprep.subr.mxu0 0.0
    %1586 = vmatpush1.msra.mxu0 0.0
    %1587 = vmatprep.mubr.f32.mxu0 0.0
    %1588 = vmatmul.mubr.f32.gmra.mrb[0].mxu0 %v1451
    %v1589 = vpop.f32.mrb[0].mxu0
    %v1590 = vadd.f32 0.0, %v1589
    %v1591 = vpop.f32.mrb[0].mxu0
    %v1592 = vadd.f32 0.0, %v1591
    %1593 = vdwg.mxu0
    %v1594 = vadd.f32 %v245, %v1519
    %v1595 = vadd.f32 %v247, %v1521
    %v1596 = vadd.f32 %v358, %v1590
    %v1597 = vadd.f32 %v360, %v1592
    %v1598 = vxor.u32 %v1594, 2147483648
    %v1599 = vxor.u32 %v1595, 2147483648
    %v1600 = vxor.u32 %v1597, 2147483648
    %v1601 = vmul.f32 %v1598, 1.442695
    %v1602 = vpow.pop %v1601
    %v1603 = vmul.f32 %v1599, 1.442695
    %v1604 = vpow.pop %v1603
    %v1605 = vmul.f32 %v1600, 1.442695
    %v1606 = vpow.pop %v1605
    %v1607 = vadd.f32 %v1602, 1.0
    %v1608 = vadd.f32 %v1604, 1.0
    %v1609 = vadd.f32 %v1606, 1.0
    %v1610 = vrcp.pop %v1607
    %v1611 = vmul.f32 1.0, %v1610
    %v1612 = vrcp.pop %v1608
    %v1613 = vmul.f32 1.0, %v1612
    %v1614 = vrcp.pop %v1609
    %v1615 = vmul.f32 1.0, %v1614
    %v1616 = vtanh.pop %v1596
    %v1617 = vmul.f32 %v1613, %v1449
    %v1618 = vmul.f32 %v1611, %v1616
    %v1619 = vadd.f32 %v1617, %v1618
    %v1620 = vtanh.pop %v1619
    %v1621 = vmul.f32 %v1615, %v1620
    %1622 = vmatprep.subr.mxu0 %v369
    %1623 = vmatpush1.msra.mxu0 %v368
    %1624 = vmatprep.subr.mxu0 %v373
    %1625 = vmatpush1.msra.mxu0 %v372
    %1626 = vmatprep.subr.mxu0 %v377
    %1627 = vmatpush1.msra.mxu0 %v376
    %1628 = vmatprep.subr.mxu0 %v381
    %1629 = vmatpush1.msra.mxu0 %v380
    %1630 = vmatprep.subr.mxu0 %v385
    %1631 = vmatpush1.msra.mxu0 %v384
    %1632 = vmatprep.subr.mxu0 %v389
    %1633 = vmatpush1.msra.mxu0 %v388
    %1634 = vmatprep.subr.mxu0 %v393
    %1635 = vmatpush1.msra.mxu0 %v392
    %1636 = vmatprep.subr.mxu0 %v397
    %1637 = vmatpush1.msra.mxu0 %v396
    %1638 = vmatprep.subr.mxu0 %v401
    %1639 = vmatpush1.msra.mxu0 %v400
    %1640 = vmatprep.subr.mxu0 %v405
    %1641 = vmatpush1.msra.mxu0 %v404
    %1642 = vmatprep.subr.mxu0 %v409
    %1643 = vmatpush1.msra.mxu0 %v408
    %1644 = vmatprep.subr.mxu0 %v413
    %1645 = vmatpush1.msra.mxu0 %v412
    %1646 = vmatprep.subr.mxu0 %v417
    %1647 = vmatpush1.msra.mxu0 %v416
    %1648 = vmatprep.subr.mxu0 %v421
    %1649 = vmatpush1.msra.mxu0 %v420
    %1650 = vmatprep.subr.mxu0 %v425
    %1651 = vmatpush1.msra.mxu0 %v424
    %1652 = vmatprep.subr.mxu0 %v429
    %1653 = vmatpush1.msra.mxu0 %v428
    %1654 = vmatprep.subr.mxu0 0.0
    %1655 = vmatpush1.msra.mxu0 0.0
    %1656 = vmatprep.subr.mxu0 0.0
    %1657 = vmatpush1.msra.mxu0 0.0
    %1658 = vmatprep.subr.mxu0 0.0
    %1659 = vmatpush1.msra.mxu0 0.0
    %1660 = vmatprep.subr.mxu0 0.0
    %1661 = vmatpush1.msra.mxu0 0.0
    %1662 = vmatprep.subr.mxu0 0.0
    %1663 = vmatpush1.msra.mxu0 0.0
    %1664 = vmatprep.subr.mxu0 0.0
    %1665 = vmatpush1.msra.mxu0 0.0
    %1666 = vmatprep.subr.mxu0 0.0
    %1667 = vmatpush1.msra.mxu0 0.0
    %1668 = vmatprep.subr.mxu0 0.0
    %1669 = vmatpush1.msra.mxu0 0.0
    %1670 = vmatprep.subr.mxu0 0.0
    %1671 = vmatpush1.msra.mxu0 0.0
    %1672 = vmatprep.subr.mxu0 0.0
    %1673 = vmatpush1.msra.mxu0 0.0
    %1674 = vmatprep.subr.mxu0 0.0
    %1675 = vmatpush1.msra.mxu0 0.0
    %1676 = vmatprep.subr.mxu0 0.0
    %1677 = vmatpush1.msra.mxu0 0.0
    %1678 = vmatprep.subr.mxu0 0.0
    %1679 = vmatpush1.msra.mxu0 0.0
    %1680 = vmatprep.subr.mxu0 0.0
    %1681 = vmatpush1.msra.mxu0 0.0
    %1682 = vmatprep.subr.mxu0 0.0
    %1683 = vmatpush1.msra.mxu0 0.0
    %1684 = vmatprep.subr.mxu0 0.0
    %1685 = vmatpush1.msra.mxu0 0.0
    %1686 = vmatprep.mubr.f32.mxu0 0.0
    %1687 = vmatmul.mubr.f32.gmra.mrb[0].mxu0 %v1621
    %v1688 = vpop.f32.mrb[0].mxu0
    %v1689 = vadd.f32 0.0, %v1688
    %v1690 = vpop.f32.mrb[0].mxu0
    %v1691 = vadd.f32 0.0, %v1690
    %1692 = vdwg.mxu0
    %1693 = vmatprep.subr.mxu0 %v371
    %1694 = vmatpush1.msra.mxu0 %v370
    %1695 = vmatprep.subr.mxu0 %v375
    %1696 = vmatpush1.msra.mxu0 %v374
    %1697 = vmatprep.subr.mxu0 %v379
    %1698 = vmatpush1.msra.mxu0 %v378
    %1699 = vmatprep.subr.mxu0 %v383
    %1700 = vmatpush1.msra.mxu0 %v382
    %1701 = vmatprep.subr.mxu0 %v387
    %1702 = vmatpush1.msra.mxu0 %v386
    %1703 = vmatprep.subr.mxu0 %v391
    %1704 = vmatpush1.msra.mxu0 %v390
    %1705 = vmatprep.subr.mxu0 %v395
    %1706 = vmatpush1.msra.mxu0 %v394
    %1707 = vmatprep.subr.mxu0 %v399
    %1708 = vmatpush1.msra.mxu0 %v398
    %1709 = vmatprep.subr.mxu0 %v403
    %1710 = vmatpush1.msra.mxu0 %v402
    %1711 = vmatprep.subr.mxu0 %v407
    %1712 = vmatpush1.msra.mxu0 %v406
    %1713 = vmatprep.subr.mxu0 %v411
    %1714 = vmatpush1.msra.mxu0 %v410
    %1715 = vmatprep.subr.mxu0 %v415
    %1716 = vmatpush1.msra.mxu0 %v414
    %1717 = vmatprep.subr.mxu0 %v419
    %1718 = vmatpush1.msra.mxu0 %v418
    %1719 = vmatprep.subr.mxu0 %v423
    %1720 = vmatpush1.msra.mxu0 %v422
    %1721 = vmatprep.subr.mxu0 %v427
    %1722 = vmatpush1.msra.mxu0 %v426
    %1723 = vmatprep.subr.mxu0 %v431
    %1724 = vmatpush1.msra.mxu0 %v430
    %1725 = vmatprep.subr.mxu0 0.0
    %1726 = vmatpush1.msra.mxu0 0.0
    %1727 = vmatprep.subr.mxu0 0.0
    %1728 = vmatpush1.msra.mxu0 0.0
    %1729 = vmatprep.subr.mxu0 0.0
    %1730 = vmatpush1.msra.mxu0 0.0
    %1731 = vmatprep.subr.mxu0 0.0
    %1732 = vmatpush1.msra.mxu0 0.0
    %1733 = vmatprep.subr.mxu0 0.0
    %1734 = vmatpush1.msra.mxu0 0.0
    %1735 = vmatprep.subr.mxu0 0.0
    %1736 = vmatpush1.msra.mxu0 0.0
    %1737 = vmatprep.subr.mxu0 0.0
    %1738 = vmatpush1.msra.mxu0 0.0
    %1739 = vmatprep.subr.mxu0 0.0
    %1740 = vmatpush1.msra.mxu0 0.0
    %1741 = vmatprep.subr.mxu0 0.0
    %1742 = vmatpush1.msra.mxu0 0.0
    %1743 = vmatprep.subr.mxu0 0.0
    %1744 = vmatpush1.msra.mxu0 0.0
    %1745 = vmatprep.subr.mxu0 0.0
    %1746 = vmatpush1.msra.mxu0 0.0
    %1747 = vmatprep.subr.mxu0 0.0
    %1748 = vmatpush1.msra.mxu0 0.0
    %1749 = vmatprep.subr.mxu0 0.0
    %1750 = vmatpush1.msra.mxu0 0.0
    %1751 = vmatprep.subr.mxu0 0.0
    %1752 = vmatpush1.msra.mxu0 0.0
    %1753 = vmatprep.subr.mxu0 0.0
    %1754 = vmatpush1.msra.mxu0 0.0
    %1755 = vmatprep.subr.mxu0 0.0
    %1756 = vmatpush1.msra.mxu0 0.0
    %1757 = vmatprep.mubr.f32.mxu0 0.0
    %1758 = vmatmul.mubr.f32.gmra.mrb[0].mxu0 %v1621
    %v1759 = vpop.f32.mrb[0].mxu0
    %v1760 = vadd.f32 0.0, %v1759
    %v1761 = vpop.f32.mrb[0].mxu0
    %v1762 = vadd.f32 0.0, %v1761
    %1763 = vdwg.mxu0
    %v1764 = vadd.f32 %v251, %v1689
    %v1765 = vadd.f32 %v253, %v1691
    %v1766 = vadd.f32 %v364, %v1760
    %v1767 = vadd.f32 %v366, %v1762
    %v1768 = vxor.u32 %v1764, 2147483648
    %v1769 = vxor.u32 %v1765, 2147483648
    %v1770 = vxor.u32 %v1767, 2147483648
    %v1771 = vmul.f32 %v1768, 1.442695
    %v1772 = vpow.pop %v1771
    %v1773 = vmul.f32 %v1769, 1.442695
    %v1774 = vpow.pop %v1773
    %v1775 = vmul.f32 %v1770, 1.442695
    %v1776 = vpow.pop %v1775
    %v1777 = vadd.f32 %v1772, 1.0
    %v1778 = vadd.f32 %v1774, 1.0
    %v1779 = vadd.f32 %v1776, 1.0
    %v1780 = vrcp.pop %v1777
    %v1781 = vmul.f32 1.0, %v1780
    %v1782 = vrcp.pop %v1778
    %v1783 = vmul.f32 1.0, %v1782
    %v1784 = vrcp.pop %v1779
    %v1785 = vmul.f32 1.0, %v1784
    %v1786 = vtanh.pop %v1766
    %v1787 = vmul.f32 %v1783, %v1619
    %v1788 = vmul.f32 %v1781, %v1786
    %v1789 = vadd.f32 %v1787, %v1788
    %v1790 = vtanh.pop %v1789
    %v1791 = vmul.f32 %v1785, %v1790
    %v1792 = vld [vmem:[#allocation8] sm:$0xff]
    %v1793 = vld [vmem:[#allocation8 + $0x8] sm:$0xff]
    %v1794 = vld [vmem:[#allocation8 + $0x10] sm:$0xff]
    %v1795 = vld [vmem:[#allocation8 + $0x18] sm:$0xff]
    %v1796 = vld [vmem:[#allocation8 + $0x20] sm:$0xff]
    %v1797 = vld [vmem:[#allocation8 + $0x28] sm:$0xff]
    %v1798 = vld [vmem:[#allocation8 + $0x30] sm:$0xff]
    %v1799 = vld [vmem:[#allocation8 + $0x38] sm:$0xff]
    %v1800 = vld [vmem:[#allocation8 + $0x40] sm:$0xff]
    %v1801 = vld [vmem:[#allocation8 + $0x48] sm:$0xff]
    %v1802 = vld [vmem:[#allocation8 + $0x50] sm:$0xff]
    %v1803 = vld [vmem:[#allocation8 + $0x58] sm:$0xff]
    %v1804 = vld [vmem:[#allocation8 + $0x60] sm:$0xff]
    %v1805 = vld [vmem:[#allocation8 + $0x68] sm:$0xff]
    %v1806 = vld [vmem:[#allocation8 + $0x70] sm:$0xff]
    %v1807 = vld [vmem:[#allocation8 + $0x78] sm:$0xff]
    %v1808 = vld [vmem:[%s5] sm:$0x1]
    %v1810 = vlaneseq
    %v1811 = vshrl.u32 %v1810, 7
    %v1812 = vsub.s32 0, %v1811
    %v1813 = vrot.slane %v1808, %v1812
    %1815 = vmatprep.subr.mxu0 0.0
    %1816 = vmatpush1.msra.mxu0 %v1792
    %1817 = vmatprep.subr.mxu0 0.0
    %1818 = vmatpush1.msra.mxu0 %v1793
    %1819 = vmatprep.subr.mxu0 0.0
    %1820 = vmatpush1.msra.mxu0 %v1794
    %1821 = vmatprep.subr.mxu0 0.0
    %1822 = vmatpush1.msra.mxu0 %v1795
    %1823 = vmatprep.subr.mxu0 0.0
    %1824 = vmatpush1.msra.mxu0 %v1796
    %1825 = vmatprep.subr.mxu0 0.0
    %1826 = vmatpush1.msra.mxu0 %v1797
    %1827 = vmatprep.subr.mxu0 0.0
    %1828 = vmatpush1.msra.mxu0 %v1798
    %1829 = vmatprep.subr.mxu0 0.0
    %1830 = vmatpush1.msra.mxu0 %v1799
    %1831 = vmatprep.subr.mxu0 0.0
    %1832 = vmatpush1.msra.mxu0 %v1800
    %1833 = vmatprep.subr.mxu0 0.0
    %1834 = vmatpush1.msra.mxu0 %v1801
    %1835 = vmatprep.subr.mxu0 0.0
    %1836 = vmatpush1.msra.mxu0 %v1802
    %1837 = vmatprep.subr.mxu0 0.0
    %1838 = vmatpush1.msra.mxu0 %v1803
    %1839 = vmatprep.subr.mxu0 0.0
    %1840 = vmatpush1.msra.mxu0 %v1804
    %1841 = vmatprep.subr.mxu0 0.0
    %1842 = vmatpush1.msra.mxu0 %v1805
    %1843 = vmatprep.subr.mxu0 0.0
    %1844 = vmatpush1.msra.mxu0 %v1806
    %1845 = vmatprep.subr.mxu0 0.0
    %1846 = vmatpush1.msra.mxu0 %v1807
    %1847 = vmatprep.subr.mxu0 0.0
    %1848 = vmatpush1.msra.mxu0 0.0
    %1849 = vmatprep.subr.mxu0 0.0
    %1850 = vmatpush1.msra.mxu0 0.0
    %1851 = vmatprep.subr.mxu0 0.0
    %1852 = vmatpush1.msra.mxu0 0.0
    %1853 = vmatprep.subr.mxu0 0.0
    %1854 = vmatpush1.msra.mxu0 0.0
    %1855 = vmatprep.subr.mxu0 0.0
    %1856 = vmatpush1.msra.mxu0 0.0
    %1857 = vmatprep.subr.mxu0 0.0
    %1858 = vmatpush1.msra.mxu0 0.0
    %1859 = vmatprep.subr.mxu0 0.0
    %1860 = vmatpush1.msra.mxu0 0.0
    %1861 = vmatprep.subr.mxu0 0.0
    %1862 = vmatpush1.msra.mxu0 0.0
    %1863 = vmatprep.subr.mxu0 0.0
    %1864 = vmatpush1.msra.mxu0 0.0
    %1865 = vmatprep.subr.mxu0 0.0
    %1866 = vmatpush1.msra.mxu0 0.0
    %1867 = vmatprep.subr.mxu0 0.0
    %1868 = vmatpush1.msra.mxu0 0.0
    %1869 = vmatprep.subr.mxu0 0.0
    %1870 = vmatpush1.msra.mxu0 0.0
    %1871 = vmatprep.subr.mxu0 0.0
    %1872 = vmatpush1.msra.mxu0 0.0
    %1873 = vmatprep.subr.mxu0 0.0
    %1874 = vmatpush1.msra.mxu0 0.0
    %1875 = vmatprep.subr.mxu0 0.0
    %1876 = vmatpush1.msra.mxu0 0.0
    %1877 = vmatprep.subr.mxu0 0.0
    %1878 = vmatpush1.msra.mxu0 0.0
    %1879 = vmatprep.mubr.f32.mxu0 0.0
    %1880 = vmatmul.mubr.f32.gmra.mrb[0].mxu0 %v1791
    %v1881 = vpop.f32.mrb[0].mxu0
    %v1882 = vadd.f32 %v1813, %v1881
    %v1883 = vpop.f32.mrb[0].mxu0
    %1884 = vdwg.mxu0
    %v1885 = vmax.f32 %v1882, 0.0
    %v1886 = vmin.f32 %v1885, 3.0
    %1887 = vst [vmem:[#allocation10] sm:$0xff] %v1886
    // Predicated region
    $region42: #{tpu_custom_call.1} parent=1 // pred_check
      _
    $region43: #{tpu_custom_call.1} parent=1 // pred_check_branch
      %1889 = sbr.rel (0) target = $region45
    $region44: #{tpu_custom_call.1} parent=1 // pred_region
      %s1891 = ssub.s32 128, 128
      %1892 = vsyncadd [#allocation4], %s1891
      %s1894 = sshll.u32 [#allocation10], 4
      %s1895 = int_to_ptr.vmem [resolvable:$true] %s1894
      %1897 = dma.vmem_to_hbm [thread:$0]  %s1895, 128, %s6, [#allocation4]
    $region45: #{tpu_custom_call.1} parent=1 // pred_fallthru
      _
    // Predicated region
    $region46: #{tpu_custom_call.1} parent=1 // pred_check
      _
    $region47: #{tpu_custom_call.1} parent=1 // pred_check_branch
      %1899 = sbr.rel (0) target = $region49
    $region48: #{tpu_custom_call.1} parent=1 // pred_region
      %1900 = dma.done [#allocation4], 128
    $region49: #{tpu_custom_call.1} parent=1 // pred_fallthru
      _
    %1901 = vsyncpa [#allocation3], 1
    %1902 = vsyncpa [#allocation6], 1
    %1903 = vsyncpa [#allocation9], 1
    %1904 = vsyncpa [#allocation4], 1

</llo_original>
